<compile_context>
chip_gen: v5e
topology: v5e:2x2
jax: 0.10.0
libtpu: 0.0.40
codegen_flags: <defaults>
</compile_context>

<pallas_src>
import math
import functools

import jax
import jax.numpy as jnp
from jax import lax
from jax.experimental import pallas as pl
from jax.experimental.pallas import tpu as pltpu


def _round_up(x, m):
    return (x + m - 1) // m * m


def _num_grid_steps(batch):
    """One grid step per TensorCore: v7x has 2 TCs/chip, v5e/v6e have 1."""
    try:
        kind = jax.devices()[0].device_kind.lower()
    except Exception:
        kind = ""
    if "v7" in kind and batch % 2 == 0:
        return 2
    return 1


def transformer_kernel(x_ref, y_ref, z_ref, mhead_ref,
                       wq_ref, bq_ref, wk_ref, bk_ref, wv_ref, bv_ref,
                       wo_ref, bo_ref,
                       g1_ref, be1_ref,
                       w1_ref, bf1_ref, w2_ref, bf2_ref,
                       g2_ref, be2_ref,
                       wc_ref, bc_ref,
                       logits_ref, attnw_ref,
                       *, num_heads, seq_len, embed_dim):
    f32, bf16 = jnp.float32, jnp.bfloat16
    S, E, H = seq_len, embed_dim, num_heads
    HS = H * S
    BB = x_ref.shape[0]             # batch elements handled by this grid step
    SP = attnw_ref.shape[-1]        # lane-padded attention-weight width (>=128)
    R = BB * S                      # rows processed by the dense matmuls

    def mm(a_bf16, w_ref, b_ref):   # bf16 MXU matmul, f32 accumulation, f32 bias
        return jnp.dot(a_bf16, w_ref[...], preferred_element_type=f32) + b_ref[...]

    # ---- Q/K/V projections over all BB*S rows (scale folded into Wq/bq) -------
    x_f = x_ref[...].reshape(R, E)                         # f32, kept for residual
    q = mm(x_f.astype(bf16), wq_ref, bq_ref)
    k = mm(y_ref[...].astype(bf16).reshape(R, E), wk_ref, bk_ref)
    v = mm(z_ref[...].astype(bf16).reshape(R, E), wv_ref, bv_ref)

    # ---- multi-head attention: batched head-block matmuls ---------------------
    # mhead[h*S+s, e] = 1 iff column e belongs to head h; applied to the H-times
    # replicated K/V so one lane-dense (S,E)@(E,HS)-style contraction per batch
    # element yields all heads' scores / head-concatenated context at once.
    mhead = mhead_ref[...]                                 # (HS, E) bf16, constant
    q3 = q.astype(bf16).reshape(BB, S, E)
    k_rep = jnp.tile(k.astype(bf16).reshape(BB, S, E), (1, H, 1)) * mhead
    v_rep = jnp.tile(v.astype(bf16).reshape(BB, S, E), (1, H, 1)) * mhead
    scores = jnp.einsum('bqe,bke->bqk', q3, k_rep,
                        preferred_element_type=f32)        # (BB, S, H*S)

    # Per-head softmax (exact per-head max + exact f32 sums) via a tiny static
    # loop over heads; the head-averaged attention weights accumulate for free.
    p_parts = []
    aw = jnp.zeros((BB, S, S), f32)
    for h in range(H):
        sh = scores[:, :, h * S:(h + 1) * S]               # (BB, S, S)
        ph = jnp.exp(sh - jnp.max(sh, axis=-1, keepdims=True))
        ph = ph * pl.reciprocal(jnp.sum(ph, axis=-1, keepdims=True), approx=True)
        aw = aw + ph
        p_parts.append(ph.astype(bf16))
    p_bf = jnp.concatenate(p_parts, axis=-1)               # (BB, S, H*S) bf16
    aw = aw * (1.0 / H)                                     # head-averaged weights

    # Lane-dense attention-weight store (padded to SP lanes; wrapper slices back).
    if SP > S:
        aw = jnp.concatenate([aw, jnp.zeros((BB, S, SP - S), f32)], axis=-1)
    attnw_ref[...] = aw

    # Head-concatenated context, columns already in PyTorch head order.
    ctx = jnp.einsum('bqk,bke->bqe', p_bf, v_rep,
                     preferred_element_type=f32).reshape(R, E)

    # ---- output projection + residual + LayerNorm1 (dropout1 = identity) ------
    attn_out = mm(ctx.astype(bf16), wo_ref, bo_ref)
    h1 = x_f + attn_out
    mu1 = jnp.mean(h1, axis=-1, keepdims=True)
    var1 = jnp.mean(jnp.square(h1 - mu1), axis=-1, keepdims=True)
    out1 = (h1 - mu1) * lax.rsqrt(var1 + 1e-5) * g1_ref[...] + be1_ref[...]

    # ---- FFN + residual + LayerNorm2 (dropout2 = identity) --------------------
    ff = jnp.maximum(mm(out1.astype(bf16), w1_ref, bf1_ref), 0.0)
    ff = mm(ff.astype(bf16), w2_ref, bf2_ref)
    h2 = out1 + ff
    mu2 = jnp.mean(h2, axis=-1, keepdims=True)
    var2 = jnp.mean(jnp.square(h2 - mu2), axis=-1, keepdims=True)
    out2 = (h2 - mu2) * lax.rsqrt(var2 + 1e-5) * g2_ref[...] + be2_ref[...]

    # ---- global average pool over sequence + lane-padded classifier -----------
    pooled = jnp.mean(out2.reshape(BB, S, E), axis=1)      # (BB, E)
    logits_ref[...] = mm(pooled.astype(bf16), wc_ref, bc_ref)   # (BB, CP)


def transformer_forward(x, y, z, params, num_heads):
    B, S, E = x.shape
    H = num_heads
    assert E % H == 0
    Dh = E // H
    HS = H * S
    F = params["w1"].shape[1]
    C = params["wc"].shape[1]
    CP = _round_up(max(C, 128), 128)       # lane-dense logits width
    SP = _round_up(max(S, 128), 128)       # lane-dense attention-weight width

    steps = _num_grid_steps(B)             # 1 on v5e/v6e, 2 on v7x (even batch)
    BB = B // steps

    bf16 = jnp.bfloat16
    scale = 1.0 / math.sqrt(Dh)
    # Wrapper-side precompute: fold attention scale into Wq/bq, pre-cast weights
    # to bf16, pad classifier to CP lanes, build the head-block mask once.
    wq = (params["wq"] * scale).astype(bf16)
    bq = params["bq"] * scale
    wk = params["wk"].astype(bf16)
    wv = params["wv"].astype(bf16)
    wo = params["wo"].astype(bf16)
    w1 = params["w1"].astype(bf16)
    w2 = params["w2"].astype(bf16)
    wc = jnp.zeros((E, CP), jnp.float32).at[:, :C].set(params["wc"]).astype(bf16)
    bc = jnp.zeros((1, CP), jnp.float32).at[:, :C].set(params["bc"])
    mhead = (lax.broadcasted_iota(jnp.int32, (HS, E), 0) // S ==
             lax.broadcasted_iota(jnp.int32, (HS, E), 1) // Dh).astype(bf16)

    batch_spec = pl.BlockSpec((BB, S, E), lambda b: (b, 0, 0))

    def const(shape):                      # whole-array resident operand
        return pl.BlockSpec(shape, lambda b: (0, 0))

    in_specs = [
        batch_spec, batch_spec, batch_spec,                # x, y, z
        const((HS, E)),                                    # head-block mask
        const((E, E)), const((1, E)),                      # Wq, bq (scaled)
        const((E, E)), const((1, E)),                      # Wk, bk
        const((E, E)), const((1, E)),                      # Wv, bv
        const((E, E)), const((1, E)),                      # Wo, bo
        const((1, E)), const((1, E)),                      # LayerNorm1 gamma/beta
        const((E, F)), const((1, F)),                      # FFN W1, b1
        const((F, E)), const((1, E)),                      # FFN W2, b2
        const((1, E)), const((1, E)),                      # LayerNorm2 gamma/beta
        const((E, CP)), const((1, CP)),                    # padded classifier
    ]
    out_specs = [
        pl.BlockSpec((BB, CP), lambda b: (b, 0)),          # padded logits
        pl.BlockSpec((BB, S, SP), lambda b: (b, 0, 0)),    # padded attn weights
    ]
    out_shape = [
        jax.ShapeDtypeStruct((B, CP), jnp.float32),
        jax.ShapeDtypeStruct((B, S, SP), jnp.float32),
    ]

    kernel = functools.partial(transformer_kernel, num_heads=H,
                               seq_len=S, embed_dim=E)
    logits_pad, attnw_pad = pl.pallas_call(
        kernel,
        out_shape=out_shape,
        grid_spec=pltpu.PrefetchScalarGridSpec(
            num_scalar_prefetch=0,
            grid=(steps,),
            in_specs=in_specs,
            out_specs=out_specs,
        ),
        compiler_params=pltpu.CompilerParams(dimension_semantics=("parallel",)),
    )(x, y, z, mhead,
      wq, bq, wk, params["bk"], wv, params["bv"],
      wo, params["bo"],
      params["g1"], params["be1"],
      w1, params["bf1"], w2, params["bf2"],
      params["g2"], params["be2"],
      wc, bc)

    return logits_pad[:, :C], attnw_pad[:, :, :S]


def init_params(key, embed_dim, ff_dim, num_classes):
    ks = jax.random.split(key, 8)
    s = 0.02
    E, F, C = embed_dim, ff_dim, num_classes
    return {
        "wq": jax.random.normal(ks[0], (E, E), jnp.float32) * s,
        "bq": jnp.zeros((1, E), jnp.float32),
        "wk": jax.random.normal(ks[1], (E, E), jnp.float32) * s,
        "bk": jnp.zeros((1, E), jnp.float32),
        "wv": jax.random.normal(ks[2], (E, E), jnp.float32) * s,
        "bv": jnp.zeros((1, E), jnp.float32),
        "wo": jax.random.normal(ks[3], (E, E), jnp.float32) * s,
        "bo": jnp.zeros((1, E), jnp.float32),
        "g1": jnp.ones((1, E), jnp.float32),
        "be1": jnp.zeros((1, E), jnp.float32),
        "w1": jax.random.normal(ks[4], (E, F), jnp.float32) * s,
        "bf1": jnp.zeros((1, F), jnp.float32),
        "w2": jax.random.normal(ks[5], (F, E), jnp.float32) * s,
        "bf2": jnp.zeros((1, E), jnp.float32),
        "g2": jnp.ones((1, E), jnp.float32),
        "be2": jnp.zeros((1, E), jnp.float32),
        "wc": jax.random.normal(ks[6], (E, C), jnp.float32) * s,
        "bc": jnp.zeros((1, C), jnp.float32),
    }


if __name__ == "__main__":
    # batch=2, seq=8, embed=32, heads=4 (head_dim=8), ff_dim=32, num_classes=2
    B, S, E, H, F, C = 2, 8, 32, 4, 32, 2

    key = jax.random.PRNGKey(0)
    kx, ky, kz, kp = jax.random.split(key, 4)
    x = jax.random.normal(kx, (B, S, E), jnp.float32)
    y = jax.random.normal(ky, (B, S, E), jnp.float32)
    z = jax.random.normal(kz, (B, S, E), jnp.float32)
    params = init_params(kp, E, F, C)

    logits, attn_weights = transformer_forward(x, y, z, params, num_heads=H)
    jax.block_until_ready((logits, attn_weights))

    assert logits.shape == (B, C)
    assert attn_weights.shape == (B, S, S)
    assert bool(jnp.all(jnp.isfinite(logits)))
    # Each attention row is a head-averaged softmax: rows must sum to ~1.
    assert bool(jnp.allclose(jnp.sum(attn_weights, axis=-1), 1.0, atol=5e-2))
    print("KERNEL_OK")
</pallas_src>

<mosaic_0001>
module attributes {stable_mosaic.version = 11 : i64} {
  func.func @transformer_kernel(%arg0: i32, %arg1: memref<2x8x32xf32, #tpu.memory_space<vmem>>, %arg2: memref<2x8x32xf32, #tpu.memory_space<vmem>>, %arg3: memref<2x8x32xf32, #tpu.memory_space<vmem>>, %arg4: memref<32x32xbf16, #tpu.memory_space<vmem>>, %arg5: memref<32x32xbf16, #tpu.memory_space<vmem>>, %arg6: memref<1x32xf32, #tpu.memory_space<vmem>>, %arg7: memref<32x32xbf16, #tpu.memory_space<vmem>>, %arg8: memref<1x32xf32, #tpu.memory_space<vmem>>, %arg9: memref<32x32xbf16, #tpu.memory_space<vmem>>, %arg10: memref<1x32xf32, #tpu.memory_space<vmem>>, %arg11: memref<32x32xbf16, #tpu.memory_space<vmem>>, %arg12: memref<1x32xf32, #tpu.memory_space<vmem>>, %arg13: memref<1x32xf32, #tpu.memory_space<vmem>>, %arg14: memref<1x32xf32, #tpu.memory_space<vmem>>, %arg15: memref<32x32xbf16, #tpu.memory_space<vmem>>, %arg16: memref<1x32xf32, #tpu.memory_space<vmem>>, %arg17: memref<32x32xbf16, #tpu.memory_space<vmem>>, %arg18: memref<1x32xf32, #tpu.memory_space<vmem>>, %arg19: memref<1x32xf32, #tpu.memory_space<vmem>>, %arg20: memref<1x32xf32, #tpu.memory_space<vmem>>, %arg21: memref<32x128xbf16, #tpu.memory_space<vmem>>, %arg22: memref<1x128xf32, #tpu.memory_space<vmem>>, %arg23: memref<2x128xf32, #tpu.memory_space<vmem>>, %arg24: memref<2x8x128xf32, #tpu.memory_space<vmem>>) attributes {dimension_semantics = [#tpu.dimension_semantics<parallel>], iteration_bounds = array<i64: 1>, scalar_prefetch = 0 : i64, scratch_operands = 0 : i64, tpu.core_type = #tpu.core_type<tc>, window_params = [{transform_indices = @transform_0, window_bounds = array<i64: 2, 8, 32>}, {transform_indices = @transform_1, window_bounds = array<i64: 2, 8, 32>}, {transform_indices = @transform_2, window_bounds = array<i64: 2, 8, 32>}, {pipeline_mode = #tpu.pipeline_mode<synchronous>, transform_indices = @transform_3, window_bounds = array<i64: 32, 32>}, {pipeline_mode = #tpu.pipeline_mode<synchronous>, transform_indices = @transform_4, window_bounds = array<i64: 32, 32>}, {pipeline_mode = #tpu.pipeline_mode<synchronous>, transform_indices = @transform_5, window_bounds = array<i64: 1, 32>}, {pipeline_mode = #tpu.pipeline_mode<synchronous>, transform_indices = @transform_6, window_bounds = array<i64: 32, 32>}, {pipeline_mode = #tpu.pipeline_mode<synchronous>, transform_indices = @transform_7, window_bounds = array<i64: 1, 32>}, {pipeline_mode = #tpu.pipeline_mode<synchronous>, transform_indices = @transform_8, window_bounds = array<i64: 32, 32>}, {pipeline_mode = #tpu.pipeline_mode<synchronous>, transform_indices = @transform_9, window_bounds = array<i64: 1, 32>}, {pipeline_mode = #tpu.pipeline_mode<synchronous>, transform_indices = @transform_10, window_bounds = array<i64: 32, 32>}, {pipeline_mode = #tpu.pipeline_mode<synchronous>, transform_indices = @transform_11, window_bounds = array<i64: 1, 32>}, {pipeline_mode = #tpu.pipeline_mode<synchronous>, transform_indices = @transform_12, window_bounds = array<i64: 1, 32>}, {pipeline_mode = #tpu.pipeline_mode<synchronous>, transform_indices = @transform_13, window_bounds = array<i64: 1, 32>}, {pipeline_mode = #tpu.pipeline_mode<synchronous>, transform_indices = @transform_14, window_bounds = array<i64: 32, 32>}, {pipeline_mode = #tpu.pipeline_mode<synchronous>, transform_indices = @transform_15, window_bounds = array<i64: 1, 32>}, {pipeline_mode = #tpu.pipeline_mode<synchronous>, transform_indices = @transform_16, window_bounds = array<i64: 32, 32>}, {pipeline_mode = #tpu.pipeline_mode<synchronous>, transform_indices = @transform_17, window_bounds = array<i64: 1, 32>}, {pipeline_mode = #tpu.pipeline_mode<synchronous>, transform_indices = @transform_18, window_bounds = array<i64: 1, 32>}, {pipeline_mode = #tpu.pipeline_mode<synchronous>, transform_indices = @transform_19, window_bounds = array<i64: 1, 32>}, {pipeline_mode = #tpu.pipeline_mode<synchronous>, transform_indices = @transform_20, window_bounds = array<i64: 32, 128>}, {pipeline_mode = #tpu.pipeline_mode<synchronous>, transform_indices = @transform_21, window_bounds = array<i64: 1, 128>}, {transform_indices = @transform_22, window_bounds = array<i64: 2, 128>}, {transform_indices = @transform_23, window_bounds = array<i64: 2, 8, 128>}]} {
    %c0 = arith.constant 0 : index
    %c0_0 = arith.constant 0 : index
    %c0_1 = arith.constant 0 : index
    %0 = vector.load %arg1[%c0, %c0_0, %c0_1] : memref<2x8x32xf32, #tpu.memory_space<vmem>>, vector<2x8x32xf32>
    %1 = vector.shape_cast %0 : vector<2x8x32xf32> to vector<16x32xf32>
    %2 = arith.truncf %1 : vector<16x32xf32> to vector<16x32xbf16>
    %c0_2 = arith.constant 0 : index
    %c0_3 = arith.constant 0 : index
    %3 = vector.load %arg5[%c0_2, %c0_3] : memref<32x32xbf16, #tpu.memory_space<vmem>>, vector<32x32xbf16>
    %cst = arith.constant dense<0.000000e+00> : vector<16x32xf32>
    %4 = tpu.matmul %2, %3, %cst {dimension_numbers = #tpu.dot_dimension_numbers<[1], [0], [0], [1], [0, 0, 1, 1], [], []>} : vector<16x32xbf16>, vector<32x32xbf16>, vector<16x32xf32> -> vector<16x32xf32>
    %c0_4 = arith.constant 0 : index
    %c0_5 = arith.constant 0 : index
    %5 = vector.load %arg6[%c0_4, %c0_5] : memref<1x32xf32, #tpu.memory_space<vmem>>, vector<1x32xf32>
    %6 = vector.broadcast %5 : vector<1x32xf32> to vector<16x32xf32>
    %7 = arith.addf %4, %6 : vector<16x32xf32>
    %c0_6 = arith.constant 0 : index
    %c0_7 = arith.constant 0 : index
    %c0_8 = arith.constant 0 : index
    %8 = vector.load %arg2[%c0_6, %c0_7, %c0_8] : memref<2x8x32xf32, #tpu.memory_space<vmem>>, vector<2x8x32xf32>
    %9 = arith.truncf %8 : vector<2x8x32xf32> to vector<2x8x32xbf16>
    %10 = vector.shape_cast %9 : vector<2x8x32xbf16> to vector<16x32xbf16>
    %c0_9 = arith.constant 0 : index
    %c0_10 = arith.constant 0 : index
    %11 = vector.load %arg7[%c0_9, %c0_10] : memref<32x32xbf16, #tpu.memory_space<vmem>>, vector<32x32xbf16>
    %cst_11 = arith.constant dense<0.000000e+00> : vector<16x32xf32>
    %12 = tpu.matmul %10, %11, %cst_11 {dimension_numbers = #tpu.dot_dimension_numbers<[1], [0], [0], [1], [0, 0, 1, 1], [], []>} : vector<16x32xbf16>, vector<32x32xbf16>, vector<16x32xf32> -> vector<16x32xf32>
    %c0_12 = arith.constant 0 : index
    %c0_13 = arith.constant 0 : index
    %13 = vector.load %arg8[%c0_12, %c0_13] : memref<1x32xf32, #tpu.memory_space<vmem>>, vector<1x32xf32>
    %14 = vector.broadcast %13 : vector<1x32xf32> to vector<16x32xf32>
    %15 = arith.addf %12, %14 : vector<16x32xf32>
    %c0_14 = arith.constant 0 : index
    %c0_15 = arith.constant 0 : index
    %c0_16 = arith.constant 0 : index
    %16 = vector.load %arg3[%c0_14, %c0_15, %c0_16] : memref<2x8x32xf32, #tpu.memory_space<vmem>>, vector<2x8x32xf32>
    %17 = arith.truncf %16 : vector<2x8x32xf32> to vector<2x8x32xbf16>
    %18 = vector.shape_cast %17 : vector<2x8x32xbf16> to vector<16x32xbf16>
    %c0_17 = arith.constant 0 : index
    %c0_18 = arith.constant 0 : index
    %19 = vector.load %arg9[%c0_17, %c0_18] : memref<32x32xbf16, #tpu.memory_space<vmem>>, vector<32x32xbf16>
    %cst_19 = arith.constant dense<0.000000e+00> : vector<16x32xf32>
    %20 = tpu.matmul %18, %19, %cst_19 {dimension_numbers = #tpu.dot_dimension_numbers<[1], [0], [0], [1], [0, 0, 1, 1], [], []>} : vector<16x32xbf16>, vector<32x32xbf16>, vector<16x32xf32> -> vector<16x32xf32>
    %c0_20 = arith.constant 0 : index
    %c0_21 = arith.constant 0 : index
    %21 = vector.load %arg10[%c0_20, %c0_21] : memref<1x32xf32, #tpu.memory_space<vmem>>, vector<1x32xf32>
    %22 = vector.broadcast %21 : vector<1x32xf32> to vector<16x32xf32>
    %23 = arith.addf %20, %22 : vector<16x32xf32>
    %c0_22 = arith.constant 0 : index
    %c0_23 = arith.constant 0 : index
    %24 = vector.load %arg4[%c0_22, %c0_23] : memref<32x32xbf16, #tpu.memory_space<vmem>>, vector<32x32xbf16>
    %25 = arith.truncf %7 : vector<16x32xf32> to vector<16x32xbf16>
    %26 = vector.shape_cast %25 : vector<16x32xbf16> to vector<2x8x32xbf16>
    %27 = arith.truncf %15 : vector<16x32xf32> to vector<16x32xbf16>
    %28 = vector.shape_cast %27 : vector<16x32xbf16> to vector<2x8x32xbf16>
    %29 = tpu.concatenate %28, %28, %28, %28 in 1 : vector<2x8x32xbf16>, vector<2x8x32xbf16>, vector<2x8x32xbf16>, vector<2x8x32xbf16> -> vector<2x32x32xbf16>
    %30 = vector.shape_cast %24 : vector<32x32xbf16> to vector<1x32x32xbf16>
    %31 = vector.broadcast %30 : vector<1x32x32xbf16> to vector<2x32x32xbf16>
    %32 = arith.mulf %29, %31 : vector<2x32x32xbf16>
    %33 = arith.truncf %23 : vector<16x32xf32> to vector<16x32xbf16>
    %34 = vector.shape_cast %33 : vector<16x32xbf16> to vector<2x8x32xbf16>
    %35 = tpu.concatenate %34, %34, %34, %34 in 1 : vector<2x8x32xbf16>, vector<2x8x32xbf16>, vector<2x8x32xbf16>, vector<2x8x32xbf16> -> vector<2x32x32xbf16>
    %36 = vector.shape_cast %24 : vector<32x32xbf16> to vector<1x32x32xbf16>
    %37 = vector.broadcast %36 : vector<1x32x32xbf16> to vector<2x32x32xbf16>
    %38 = arith.mulf %35, %37 : vector<2x32x32xbf16>
    "tpu.trace_start"() <{level = 10 : i32, message = "bqe,bke->bqk"}> : () -> ()
    %cst_24 = arith.constant dense<0.000000e+00> : vector<2x8x32xf32>
    %39 = tpu.matmul %26, %32, %cst_24 {dimension_numbers = #tpu.dot_dimension_numbers<[2], [2], [1], [1], [0, 0, 0, 1, 1, 1], [0], [0]>} : vector<2x8x32xbf16>, vector<2x32x32xbf16>, vector<2x8x32xf32> -> vector<2x8x32xf32>
    %cst_25 = arith.constant 0.000000e+00 : f32
    "tpu.trace_stop"() : () -> ()
    %40 = vector.broadcast %cst_25 : f32 to vector<2x8x8xf32>
    %41 = vector.extract_strided_slice %39 {offsets = [0, 0, 0], sizes = [2, 8, 8], strides = [1, 1, 1]} : vector<2x8x32xf32> to vector<2x8x8xf32>
    %cst_26 = arith.constant dense<0xFF800000> : vector<2x8xf32>
    %42 = vector.multi_reduction <maximumf>, %41, %cst_26 [2] : vector<2x8x8xf32> to vector<2x8xf32>
    %43 = vector.shape_cast %42 : vector<2x8xf32> to vector<2x8x1xf32>
    %44 = vector.broadcast %43 : vector<2x8x1xf32> to vector<2x8x8xf32>
    %45 = arith.subf %41, %44 : vector<2x8x8xf32>
    %46 = math.exp %45 : vector<2x8x8xf32>
    %cst_27 = arith.constant dense<0.000000e+00> : vector<2x8xf32>
    %47 = vector.multi_reduction <add>, %46, %cst_27 [2] : vector<2x8x8xf32> to vector<2x8xf32>
    %48 = vector.shape_cast %47 : vector<2x8xf32> to vector<2x8x1xf32>
    %49 = tpu.reciprocal %48 {approx = true} : vector<2x8x1xf32> -> vector<2x8x1xf32>
    %50 = vector.broadcast %49 : vector<2x8x1xf32> to vector<2x8x8xf32>
    %51 = arith.mulf %46, %50 : vector<2x8x8xf32>
    %52 = arith.addf %40, %51 : vector<2x8x8xf32>
    %53 = arith.truncf %51 : vector<2x8x8xf32> to vector<2x8x8xbf16>
    %54 = vector.extract_strided_slice %39 {offsets = [0, 0, 8], sizes = [2, 8, 8], strides = [1, 1, 1]} : vector<2x8x32xf32> to vector<2x8x8xf32>
    %cst_28 = arith.constant dense<0xFF800000> : vector<2x8xf32>
    %55 = vector.multi_reduction <maximumf>, %54, %cst_28 [2] : vector<2x8x8xf32> to vector<2x8xf32>
    %56 = vector.shape_cast %55 : vector<2x8xf32> to vector<2x8x1xf32>
    %57 = vector.broadcast %56 : vector<2x8x1xf32> to vector<2x8x8xf32>
    %58 = arith.subf %54, %57 : vector<2x8x8xf32>
    %59 = math.exp %58 : vector<2x8x8xf32>
    %cst_29 = arith.constant dense<0.000000e+00> : vector<2x8xf32>
    %60 = vector.multi_reduction <add>, %59, %cst_29 [2] : vector<2x8x8xf32> to vector<2x8xf32>
    %61 = vector.shape_cast %60 : vector<2x8xf32> to vector<2x8x1xf32>
    %62 = tpu.reciprocal %61 {approx = true} : vector<2x8x1xf32> -> vector<2x8x1xf32>
    %63 = vector.broadcast %62 : vector<2x8x1xf32> to vector<2x8x8xf32>
    %64 = arith.mulf %59, %63 : vector<2x8x8xf32>
    %65 = arith.addf %52, %64 : vector<2x8x8xf32>
    %66 = arith.truncf %64 : vector<2x8x8xf32> to vector<2x8x8xbf16>
    %67 = vector.extract_strided_slice %39 {offsets = [0, 0, 16], sizes = [2, 8, 8], strides = [1, 1, 1]} : vector<2x8x32xf32> to vector<2x8x8xf32>
    %cst_30 = arith.constant dense<0xFF800000> : vector<2x8xf32>
    %68 = vector.multi_reduction <maximumf>, %67, %cst_30 [2] : vector<2x8x8xf32> to vector<2x8xf32>
    %69 = vector.shape_cast %68 : vector<2x8xf32> to vector<2x8x1xf32>
    %70 = vector.broadcast %69 : vector<2x8x1xf32> to vector<2x8x8xf32>
    %71 = arith.subf %67, %70 : vector<2x8x8xf32>
    %72 = math.exp %71 : vector<2x8x8xf32>
    %cst_31 = arith.constant dense<0.000000e+00> : vector<2x8xf32>
    %73 = vector.multi_reduction <add>, %72, %cst_31 [2] : vector<2x8x8xf32> to vector<2x8xf32>
    %74 = vector.shape_cast %73 : vector<2x8xf32> to vector<2x8x1xf32>
    %75 = tpu.reciprocal %74 {approx = true} : vector<2x8x1xf32> -> vector<2x8x1xf32>
    %76 = vector.broadcast %75 : vector<2x8x1xf32> to vector<2x8x8xf32>
    %77 = arith.mulf %72, %76 : vector<2x8x8xf32>
    %78 = arith.addf %65, %77 : vector<2x8x8xf32>
    %79 = arith.truncf %77 : vector<2x8x8xf32> to vector<2x8x8xbf16>
    %80 = vector.extract_strided_slice %39 {offsets = [0, 0, 24], sizes = [2, 8, 8], strides = [1, 1, 1]} : vector<2x8x32xf32> to vector<2x8x8xf32>
    %cst_32 = arith.constant dense<0xFF800000> : vector<2x8xf32>
    %81 = vector.multi_reduction <maximumf>, %80, %cst_32 [2] : vector<2x8x8xf32> to vector<2x8xf32>
    %82 = vector.shape_cast %81 : vector<2x8xf32> to vector<2x8x1xf32>
    %83 = vector.broadcast %82 : vector<2x8x1xf32> to vector<2x8x8xf32>
    %84 = arith.subf %80, %83 : vector<2x8x8xf32>
    %85 = math.exp %84 : vector<2x8x8xf32>
    %cst_33 = arith.constant dense<0.000000e+00> : vector<2x8xf32>
    %86 = vector.multi_reduction <add>, %85, %cst_33 [2] : vector<2x8x8xf32> to vector<2x8xf32>
    %87 = vector.shape_cast %86 : vector<2x8xf32> to vector<2x8x1xf32>
    %88 = tpu.reciprocal %87 {approx = true} : vector<2x8x1xf32> -> vector<2x8x1xf32>
    %89 = vector.broadcast %88 : vector<2x8x1xf32> to vector<2x8x8xf32>
    %90 = arith.mulf %85, %89 : vector<2x8x8xf32>
    %91 = arith.addf %78, %90 : vector<2x8x8xf32>
    %92 = arith.truncf %90 : vector<2x8x8xf32> to vector<2x8x8xbf16>
    %93 = tpu.concatenate %53, %66, %79, %92 in 2 : vector<2x8x8xbf16>, vector<2x8x8xbf16>, vector<2x8x8xbf16>, vector<2x8x8xbf16> -> vector<2x8x32xbf16>
    %cst_34 = arith.constant 2.500000e-01 : f32
    %94 = vector.broadcast %cst_34 : f32 to vector<2x8x8xf32>
    %95 = arith.mulf %91, %94 : vector<2x8x8xf32>
    %cst_35 = arith.constant 0.000000e+00 : f32
    %96 = vector.broadcast %cst_35 : f32 to vector<2x8x120xf32>
    %97 = tpu.concatenate %95, %96 in 2 : vector<2x8x8xf32>, vector<2x8x120xf32> -> vector<2x8x128xf32>
    %c0_36 = arith.constant 0 : index
    %c0_37 = arith.constant 0 : index
    %c0_38 = arith.constant 0 : index
    %98 = vector.load %arg24[%c0_36, %c0_37, %c0_38] : memref<2x8x128xf32, #tpu.memory_space<vmem>>, vector<2x8x128xf32>
    tpu.vector_store %arg24[%c0_36, %c0_37, %c0_38], %97 {strides = array<i32>} : memref<2x8x128xf32, #tpu.memory_space<vmem>>, vector<2x8x128xf32>,
    "tpu.trace_start"() <{level = 10 : i32, message = "bqk,bke->bqe"}> : () -> ()
    %cst_39 = arith.constant dense<0.000000e+00> : vector<2x8x32xf32>
    %99 = tpu.matmul %93, %38, %cst_39 {dimension_numbers = #tpu.dot_dimension_numbers<[2], [1], [1], [2], [0, 0, 0, 1, 1, 2], [0], [0]>} : vector<2x8x32xbf16>, vector<2x32x32xbf16>, vector<2x8x32xf32> -> vector<2x8x32xf32>
    "tpu.trace_stop"() : () -> ()
    %100 = vector.shape_cast %99 : vector<2x8x32xf32> to vector<16x32xf32>
    %101 = arith.truncf %100 : vector<16x32xf32> to vector<16x32xbf16>
    %c0_40 = arith.constant 0 : index
    %c0_41 = arith.constant 0 : index
    %102 = vector.load %arg11[%c0_40, %c0_41] : memref<32x32xbf16, #tpu.memory_space<vmem>>, vector<32x32xbf16>
    %cst_42 = arith.constant dense<0.000000e+00> : vector<16x32xf32>
    %103 = tpu.matmul %101, %102, %cst_42 {dimension_numbers = #tpu.dot_dimension_numbers<[1], [0], [0], [1], [0, 0, 1, 1], [], []>} : vector<16x32xbf16>, vector<32x32xbf16>, vector<16x32xf32> -> vector<16x32xf32>
    %c0_43 = arith.constant 0 : index
    %c0_44 = arith.constant 0 : index
    %104 = vector.load %arg12[%c0_43, %c0_44] : memref<1x32xf32, #tpu.memory_space<vmem>>, vector<1x32xf32>
    %105 = vector.broadcast %104 : vector<1x32xf32> to vector<16x32xf32>
    %106 = arith.addf %103, %105 : vector<16x32xf32>
    %107 = arith.addf %1, %106 : vector<16x32xf32>
    %cst_45 = arith.constant dense<0.000000e+00> : vector<16xf32>
    %108 = vector.multi_reduction <add>, %107, %cst_45 [1] : vector<16x32xf32> to vector<16xf32>
    %109 = vector.shape_cast %108 : vector<16xf32> to vector<16x1xf32>
    %cst_46 = arith.constant 3.200000e+01 : f32
    %110 = vector.broadcast %cst_46 : f32 to vector<16x1xf32>
    %111 = arith.divf %109, %110 : vector<16x1xf32>
    %112 = vector.broadcast %111 : vector<16x1xf32> to vector<16x32xf32>
    %113 = arith.subf %107, %112 : vector<16x32xf32>
    %114 = arith.mulf %113, %113 : vector<16x32xf32>
    %cst_47 = arith.constant dense<0.000000e+00> : vector<16xf32>
    %115 = vector.multi_reduction <add>, %114, %cst_47 [1] : vector<16x32xf32> to vector<16xf32>
    %116 = vector.shape_cast %115 : vector<16xf32> to vector<16x1xf32>
    %cst_48 = arith.constant 3.200000e+01 : f32
    %117 = vector.broadcast %cst_48 : f32 to vector<16x1xf32>
    %118 = arith.divf %116, %117 : vector<16x1xf32>
    %119 = vector.broadcast %111 : vector<16x1xf32> to vector<16x32xf32>
    %120 = arith.subf %107, %119 : vector<16x32xf32>
    %cst_49 = arith.constant 9.99999974E-6 : f32
    %121 = vector.broadcast %cst_49 : f32 to vector<16x1xf32>
    %122 = arith.addf %118, %121 : vector<16x1xf32>
    %123 = math.rsqrt %122 : vector<16x1xf32>
    %124 = vector.broadcast %123 : vector<16x1xf32> to vector<16x32xf32>
    %125 = arith.mulf %120, %124 : vector<16x32xf32>
    %c0_50 = arith.constant 0 : index
    %c0_51 = arith.constant 0 : index
    %126 = vector.load %arg13[%c0_50, %c0_51] : memref<1x32xf32, #tpu.memory_space<vmem>>, vector<1x32xf32>
    %127 = vector.broadcast %126 : vector<1x32xf32> to vector<16x32xf32>
    %128 = arith.mulf %125, %127 : vector<16x32xf32>
    %c0_52 = arith.constant 0 : index
    %c0_53 = arith.constant 0 : index
    %129 = vector.load %arg14[%c0_52, %c0_53] : memref<1x32xf32, #tpu.memory_space<vmem>>, vector<1x32xf32>
    %130 = vector.broadcast %129 : vector<1x32xf32> to vector<16x32xf32>
    %131 = arith.addf %128, %130 : vector<16x32xf32>
    %132 = arith.truncf %131 : vector<16x32xf32> to vector<16x32xbf16>
    %c0_54 = arith.constant 0 : index
    %c0_55 = arith.constant 0 : index
    %133 = vector.load %arg15[%c0_54, %c0_55] : memref<32x32xbf16, #tpu.memory_space<vmem>>, vector<32x32xbf16>
    %cst_56 = arith.constant dense<0.000000e+00> : vector<16x32xf32>
    %134 = tpu.matmul %132, %133, %cst_56 {dimension_numbers = #tpu.dot_dimension_numbers<[1], [0], [0], [1], [0, 0, 1, 1], [], []>} : vector<16x32xbf16>, vector<32x32xbf16>, vector<16x32xf32> -> vector<16x32xf32>
    %c0_57 = arith.constant 0 : index
    %c0_58 = arith.constant 0 : index
    %135 = vector.load %arg16[%c0_57, %c0_58] : memref<1x32xf32, #tpu.memory_space<vmem>>, vector<1x32xf32>
    %136 = vector.broadcast %135 : vector<1x32xf32> to vector<16x32xf32>
    %137 = arith.addf %134, %136 : vector<16x32xf32>
    %cst_59 = arith.constant 0.000000e+00 : f32
    %138 = vector.broadcast %cst_59 : f32 to vector<16x32xf32>
    %139 = arith.maximumf %137, %138 : vector<16x32xf32>
    %140 = arith.truncf %139 : vector<16x32xf32> to vector<16x32xbf16>
    %c0_60 = arith.constant 0 : index
    %c0_61 = arith.constant 0 : index
    %141 = vector.load %arg17[%c0_60, %c0_61] : memref<32x32xbf16, #tpu.memory_space<vmem>>, vector<32x32xbf16>
    %cst_62 = arith.constant dense<0.000000e+00> : vector<16x32xf32>
    %142 = tpu.matmul %140, %141, %cst_62 {dimension_numbers = #tpu.dot_dimension_numbers<[1], [0], [0], [1], [0, 0, 1, 1], [], []>} : vector<16x32xbf16>, vector<32x32xbf16>, vector<16x32xf32> -> vector<16x32xf32>
    %c0_63 = arith.constant 0 : index
    %c0_64 = arith.constant 0 : index
    %143 = vector.load %arg18[%c0_63, %c0_64] : memref<1x32xf32, #tpu.memory_space<vmem>>, vector<1x32xf32>
    %144 = vector.broadcast %143 : vector<1x32xf32> to vector<16x32xf32>
    %145 = arith.addf %142, %144 : vector<16x32xf32>
    %146 = arith.addf %131, %145 : vector<16x32xf32>
    %cst_65 = arith.constant dense<0.000000e+00> : vector<16xf32>
    %147 = vector.multi_reduction <add>, %146, %cst_65 [1] : vector<16x32xf32> to vector<16xf32>
    %148 = vector.shape_cast %147 : vector<16xf32> to vector<16x1xf32>
    %cst_66 = arith.constant 3.200000e+01 : f32
    %149 = vector.broadcast %cst_66 : f32 to vector<16x1xf32>
    %150 = arith.divf %148, %149 : vector<16x1xf32>
    %151 = vector.broadcast %150 : vector<16x1xf32> to vector<16x32xf32>
    %152 = arith.subf %146, %151 : vector<16x32xf32>
    %153 = arith.mulf %152, %152 : vector<16x32xf32>
    %cst_67 = arith.constant dense<0.000000e+00> : vector<16xf32>
    %154 = vector.multi_reduction <add>, %153, %cst_67 [1] : vector<16x32xf32> to vector<16xf32>
    %155 = vector.shape_cast %154 : vector<16xf32> to vector<16x1xf32>
    %cst_68 = arith.constant 3.200000e+01 : f32
    %156 = vector.broadcast %cst_68 : f32 to vector<16x1xf32>
    %157 = arith.divf %155, %156 : vector<16x1xf32>
    %158 = vector.broadcast %150 : vector<16x1xf32> to vector<16x32xf32>
    %159 = arith.subf %146, %158 : vector<16x32xf32>
    %cst_69 = arith.constant 9.99999974E-6 : f32
    %160 = vector.broadcast %cst_69 : f32 to vector<16x1xf32>
    %161 = arith.addf %157, %160 : vector<16x1xf32>
    %162 = math.rsqrt %161 : vector<16x1xf32>
    %163 = vector.broadcast %162 : vector<16x1xf32> to vector<16x32xf32>
    %164 = arith.mulf %159, %163 : vector<16x32xf32>
    %c0_70 = arith.constant 0 : index
    %c0_71 = arith.constant 0 : index
    %165 = vector.load %arg19[%c0_70, %c0_71] : memref<1x32xf32, #tpu.memory_space<vmem>>, vector<1x32xf32>
    %166 = vector.broadcast %165 : vector<1x32xf32> to vector<16x32xf32>
    %167 = arith.mulf %164, %166 : vector<16x32xf32>
    %c0_72 = arith.constant 0 : index
    %c0_73 = arith.constant 0 : index
    %168 = vector.load %arg20[%c0_72, %c0_73] : memref<1x32xf32, #tpu.memory_space<vmem>>, vector<1x32xf32>
    %169 = vector.broadcast %168 : vector<1x32xf32> to vector<16x32xf32>
    %170 = arith.addf %167, %169 : vector<16x32xf32>
    %171 = vector.shape_cast %170 : vector<16x32xf32> to vector<2x8x32xf32>
    %cst_74 = arith.constant dense<0.000000e+00> : vector<2x32xf32>
    %172 = vector.multi_reduction <add>, %171, %cst_74 [1] : vector<2x8x32xf32> to vector<2x32xf32>
    %cst_75 = arith.constant 8.000000e+00 : f32
    %173 = vector.broadcast %cst_75 : f32 to vector<2x32xf32>
    %174 = arith.divf %172, %173 : vector<2x32xf32>
    %175 = arith.truncf %174 : vector<2x32xf32> to vector<2x32xbf16>
    %c0_76 = arith.constant 0 : index
    %c0_77 = arith.constant 0 : index
    %176 = vector.load %arg21[%c0_76, %c0_77] : memref<32x128xbf16, #tpu.memory_space<vmem>>, vector<32x128xbf16>
    %cst_78 = arith.constant dense<0.000000e+00> : vector<2x128xf32>
    %177 = tpu.matmul %175, %176, %cst_78 {dimension_numbers = #tpu.dot_dimension_numbers<[1], [0], [0], [1], [0, 0, 1, 1], [], []>} : vector<2x32xbf16>, vector<32x128xbf16>, vector<2x128xf32> -> vector<2x128xf32>
    %c0_79 = arith.constant 0 : index
    %c0_80 = arith.constant 0 : index
    %178 = vector.load %arg22[%c0_79, %c0_80] : memref<1x128xf32, #tpu.memory_space<vmem>>, vector<1x128xf32>
    %179 = vector.broadcast %178 : vector<1x128xf32> to vector<2x128xf32>
    %180 = arith.addf %177, %179 : vector<2x128xf32>
    %c0_81 = arith.constant 0 : index
    %c0_82 = arith.constant 0 : index
    %181 = vector.load %arg23[%c0_81, %c0_82] : memref<2x128xf32, #tpu.memory_space<vmem>>, vector<2x128xf32>
    tpu.vector_store %arg23[%c0_81, %c0_82], %180 {strides = array<i32>} : memref<2x128xf32, #tpu.memory_space<vmem>>, vector<2x128xf32>,
    return
  }
  func.func @transform_0(%arg0: i32) -> (i32, i32, i32) {
    %c0_i32 = arith.constant 0 : i32
    %c0_i32_0 = arith.constant 0 : i32
    %c0_i32_1 = arith.constant 0 : i32
    return %arg0, %c0_i32, %c0_i32_0 : i32, i32, i32
  }
  func.func @transform_1(%arg0: i32) -> (i32, i32, i32) {
    %c0_i32 = arith.constant 0 : i32
    %c0_i32_0 = arith.constant 0 : i32
    %c0_i32_1 = arith.constant 0 : i32
    return %arg0, %c0_i32, %c0_i32_0 : i32, i32, i32
  }
  func.func @transform_2(%arg0: i32) -> (i32, i32, i32) {
    %c0_i32 = arith.constant 0 : i32
    %c0_i32_0 = arith.constant 0 : i32
    %c0_i32_1 = arith.constant 0 : i32
    return %arg0, %c0_i32, %c0_i32_0 : i32, i32, i32
  }
  func.func @transform_3(%arg0: i32) -> (i32, i32) {
    %c0_i32 = arith.constant 0 : i32
    %c0_i32_0 = arith.constant 0 : i32
    %c0_i32_1 = arith.constant 0 : i32
    return %c0_i32, %c0_i32_0 : i32, i32
  }
  func.func @transform_4(%arg0: i32) -> (i32, i32) {
    %c0_i32 = arith.constant 0 : i32
    %c0_i32_0 = arith.constant 0 : i32
    %c0_i32_1 = arith.constant 0 : i32
    return %c0_i32, %c0_i32_0 : i32, i32
  }
  func.func @transform_5(%arg0: i32) -> (i32, i32) {
    %c0_i32 = arith.constant 0 : i32
    %c0_i32_0 = arith.constant 0 : i32
    %c0_i32_1 = arith.constant 0 : i32
    return %c0_i32, %c0_i32_0 : i32, i32
  }
  func.func @transform_6(%arg0: i32) -> (i32, i32) {
    %c0_i32 = arith.constant 0 : i32
    %c0_i32_0 = arith.constant 0 : i32
    %c0_i32_1 = arith.constant 0 : i32
    return %c0_i32, %c0_i32_0 : i32, i32
  }
  func.func @transform_7(%arg0: i32) -> (i32, i32) {
    %c0_i32 = arith.constant 0 : i32
    %c0_i32_0 = arith.constant 0 : i32
    %c0_i32_1 = arith.constant 0 : i32
    return %c0_i32, %c0_i32_0 : i32, i32
  }
  func.func @transform_8(%arg0: i32) -> (i32, i32) {
    %c0_i32 = arith.constant 0 : i32
    %c0_i32_0 = arith.constant 0 : i32
    %c0_i32_1 = arith.constant 0 : i32
    return %c0_i32, %c0_i32_0 : i32, i32
  }
  func.func @transform_9(%arg0: i32) -> (i32, i32) {
    %c0_i32 = arith.constant 0 : i32
    %c0_i32_0 = arith.constant 0 : i32
    %c0_i32_1 = arith.constant 0 : i32
    return %c0_i32, %c0_i32_0 : i32, i32
  }
  func.func @transform_10(%arg0: i32) -> (i32, i32) {
    %c0_i32 = arith.constant 0 : i32
    %c0_i32_0 = arith.constant 0 : i32
    %c0_i32_1 = arith.constant 0 : i32
    return %c0_i32, %c0_i32_0 : i32, i32
  }
  func.func @transform_11(%arg0: i32) -> (i32, i32) {
    %c0_i32 = arith.constant 0 : i32
    %c0_i32_0 = arith.constant 0 : i32
    %c0_i32_1 = arith.constant 0 : i32
    return %c0_i32, %c0_i32_0 : i32, i32
  }
  func.func @transform_12(%arg0: i32) -> (i32, i32) {
    %c0_i32 = arith.constant 0 : i32
    %c0_i32_0 = arith.constant 0 : i32
    %c0_i32_1 = arith.constant 0 : i32
    return %c0_i32, %c0_i32_0 : i32, i32
  }
  func.func @transform_13(%arg0: i32) -> (i32, i32) {
    %c0_i32 = arith.constant 0 : i32
    %c0_i32_0 = arith.constant 0 : i32
    %c0_i32_1 = arith.constant 0 : i32
    return %c0_i32, %c0_i32_0 : i32, i32
  }
  func.func @transform_14(%arg0: i32) -> (i32, i32) {
    %c0_i32 = arith.constant 0 : i32
    %c0_i32_0 = arith.constant 0 : i32
    %c0_i32_1 = arith.constant 0 : i32
    return %c0_i32, %c0_i32_0 : i32, i32
  }
  func.func @transform_15(%arg0: i32) -> (i32, i32) {
    %c0_i32 = arith.constant 0 : i32
    %c0_i32_0 = arith.constant 0 : i32
    %c0_i32_1 = arith.constant 0 : i32
    return %c0_i32, %c0_i32_0 : i32, i32
  }
  func.func @transform_16(%arg0: i32) -> (i32, i32) {
    %c0_i32 = arith.constant 0 : i32
    %c0_i32_0 = arith.constant 0 : i32
    %c0_i32_1 = arith.constant 0 : i32
    return %c0_i32, %c0_i32_0 : i32, i32
  }
  func.func @transform_17(%arg0: i32) -> (i32, i32) {
    %c0_i32 = arith.constant 0 : i32
    %c0_i32_0 = arith.constant 0 : i32
    %c0_i32_1 = arith.constant 0 : i32
    return %c0_i32, %c0_i32_0 : i32, i32
  }
  func.func @transform_18(%arg0: i32) -> (i32, i32) {
    %c0_i32 = arith.constant 0 : i32
    %c0_i32_0 = arith.constant 0 : i32
    %c0_i32_1 = arith.constant 0 : i32
    return %c0_i32, %c0_i32_0 : i32, i32
  }
  func.func @transform_19(%arg0: i32) -> (i32, i32) {
    %c0_i32 = arith.constant 0 : i32
    %c0_i32_0 = arith.constant 0 : i32
    %c0_i32_1 = arith.constant 0 : i32
    return %c0_i32, %c0_i32_0 : i32, i32
  }
  func.func @transform_20(%arg0: i32) -> (i32, i32) {
    %c0_i32 = arith.constant 0 : i32
    %c0_i32_0 = arith.constant 0 : i32
    %c0_i32_1 = arith.constant 0 : i32
    return %c0_i32, %c0_i32_0 : i32, i32
  }
  func.func @transform_21(%arg0: i32) -> (i32, i32) {
    %c0_i32 = arith.constant 0 : i32
    %c0_i32_0 = arith.constant 0 : i32
    %c0_i32_1 = arith.constant 0 : i32
    return %c0_i32, %c0_i32_0 : i32, i32
  }
  func.func @transform_22(%arg0: i32) -> (i32, i32) {
    %c0_i32 = arith.constant 0 : i32
    %c0_i32_0 = arith.constant 0 : i32
    return %arg0, %c0_i32 : i32, i32
  }
  func.func @transform_23(%arg0: i32) -> (i32, i32, i32) {
    %c0_i32 = arith.constant 0 : i32
    %c0_i32_0 = arith.constant 0 : i32
    %c0_i32_1 = arith.constant 0 : i32
    return %arg0, %c0_i32, %c0_i32_0 : i32, i32, i32
  }
}

</mosaic_0001>

<llo_original>
// kernel: tpu_custom_call.1
$region0: #{tpu_custom_call.1}
  #allocation0 [shape = 'u32[]', space=smem, size = 0x4, offset = 0x4, fixed_abs, tag = 'smem constant byte address 0x4 - core index']
  #allocation1 [shape = 'u32[72,128]{1,0:T(1,128)}', space=vmem, size = 0x9000, scoped, tag = 'internal scratch']
  %s0 = inlined_call_operand.hbm [shape: f32[2,8,32], index: 0, kind: input, shape index: {}]
  %s1 = inlined_call_operand.hbm [shape: f32[2,8,32], index: 1, kind: input, shape index: {}]
  %s2 = inlined_call_operand.hbm [shape: f32[2,8,32], index: 2, kind: input, shape index: {}]
  %s3 = inlined_call_operand.hbm [shape: bf16[32,32], index: 3, kind: input, shape index: {}]
  %s4 = inlined_call_operand.hbm [shape: bf16[32,32], index: 4, kind: input, shape index: {}]
  %s5 = inlined_call_operand.vmem [shape: f32[1,32], index: 5, kind: input, shape index: {}]
  %s6 = inlined_call_operand.hbm [shape: bf16[32,32], index: 6, kind: input, shape index: {}]
  %s7 = inlined_call_operand.vmem [shape: f32[1,32], index: 7, kind: input, shape index: {}]
  %s8 = inlined_call_operand.hbm [shape: bf16[32,32], index: 8, kind: input, shape index: {}]
  %s9 = inlined_call_operand.vmem [shape: f32[1,32], index: 9, kind: input, shape index: {}]
  %s10 = inlined_call_operand.hbm [shape: bf16[32,32], index: 10, kind: input, shape index: {}]
  %s11 = inlined_call_operand.hbm [shape: f32[1,32], index: 11, kind: input, shape index: {}]
  %s12 = inlined_call_operand.hbm [shape: f32[1,32], index: 12, kind: input, shape index: {}]
  %s13 = inlined_call_operand.hbm [shape: f32[1,32], index: 13, kind: input, shape index: {}]
  %s14 = inlined_call_operand.hbm [shape: bf16[32,32], index: 14, kind: input, shape index: {}]
  %s15 = inlined_call_operand.hbm [shape: f32[1,32], index: 15, kind: input, shape index: {}]
  %s16 = inlined_call_operand.hbm [shape: bf16[32,32], index: 16, kind: input, shape index: {}]
  %s17 = inlined_call_operand.hbm [shape: f32[1,32], index: 17, kind: input, shape index: {}]
  %s18 = inlined_call_operand.hbm [shape: f32[1,32], index: 18, kind: input, shape index: {}]
  %s19 = inlined_call_operand.hbm [shape: f32[1,32], index: 19, kind: input, shape index: {}]
  %s20 = inlined_call_operand.vmem [shape: bf16[32,128], index: 20, kind: input, shape index: {}]
  %s21 = inlined_call_operand.vmem [shape: f32[1,128], index: 21, kind: input, shape index: {}]
  %s22 = inlined_call_operand.hbm [shape: f32[2,128], index: 22, kind: output, shape index: {0}]
  %s23 = inlined_call_operand.hbm [shape: f32[2,8,128], index: 23, kind: output, shape index: {1}]
  %24 = xla_tuple %s22, %s23
  %s25 = sld [smem:[#allocation0]]
  $region174: #{tpu_custom_call.1} parent=0
    _
  %s27 = ssub.s32 1, %s25
  %s28 = scalar_select 0, %s27, %s25
  $region1: #{tpu_custom_call.1} parent=0
    #allocation2 [shape = 'u8[8192]{0}', space=vmem, size = 0x2000, scoped, tag = 'input window, operand 0, single buffered']
    #allocation3 [shape = 's32[1]{0}', space=sflag, size = 0x4, scoped, tag = 'scoped memory for tpu_custom_call.1']
    #allocation4 [shape = 's32[1]{0}', space=sflag, size = 0x4, scoped, tag = 'scoped memory for tpu_custom_call.1']
    #allocation5 [shape = 'u8[8192]{0}', space=vmem, size = 0x2000, scoped, tag = 'input window, operand 1, single buffered']
    #allocation6 [shape = 's32[1]{0}', space=sflag, size = 0x4, scoped, tag = 'scoped memory for tpu_custom_call.1']
    #allocation7 [shape = 'u8[8192]{0}', space=vmem, size = 0x2000, scoped, tag = 'input window, operand 2, single buffered']
    #allocation8 [shape = 'u8[8192]{0}', space=vmem, size = 0x2000, scoped, tag = 'input window, operand 3, single buffered']
    #allocation9 [shape = 's32[1]{0}', space=sflag, size = 0x4, scoped, tag = 'scoped memory for tpu_custom_call.1']
    #allocation10 [shape = 'u8[8192]{0}', space=vmem, size = 0x2000, scoped, tag = 'input window, operand 4, single buffered']
    #allocation11 [shape = 'u8[8192]{0}', space=vmem, size = 0x2000, scoped, tag = 'input window, operand 6, single buffered']
    #allocation12 [shape = 's32[1]{0}', space=sflag, size = 0x4, scoped, tag = 'scoped memory for tpu_custom_call.1']
    #allocation13 [shape = 'u8[8192]{0}', space=vmem, size = 0x2000, scoped, tag = 'input window, operand 8, single buffered']
    #allocation14 [shape = 'u8[8192]{0}', space=vmem, size = 0x2000, scoped, tag = 'input window, operand 10, single buffered']
    #allocation15 [shape = 's32[1]{0}', space=sflag, size = 0x4, scoped, tag = 'scoped memory for tpu_custom_call.1']
    #allocation16 [shape = 'u8[512]{0}', space=vmem, size = 0x400, scoped, tag = 'input window, operand 11, single buffered']
    #allocation17 [shape = 'u8[512]{0}', space=vmem, size = 0x400, scoped, tag = 'input window, operand 12, single buffered']
    #allocation18 [shape = 's32[1]{0}', space=sflag, size = 0x4, scoped, tag = 'scoped memory for tpu_custom_call.1']
    #allocation19 [shape = 'u8[512]{0}', space=vmem, size = 0x400, scoped, tag = 'input window, operand 13, single buffered']
    #allocation20 [shape = 'u8[8192]{0}', space=vmem, size = 0x2000, scoped, tag = 'input window, operand 14, single buffered']
    #allocation21 [shape = 's32[1]{0}', space=sflag, size = 0x4, scoped, tag = 'scoped memory for tpu_custom_call.1']
    #allocation22 [shape = 'u8[512]{0}', space=vmem, size = 0x400, scoped, tag = 'input window, operand 15, single buffered']
    #allocation23 [shape = 'u8[8192]{0}', space=vmem, size = 0x2000, scoped, tag = 'input window, operand 16, single buffered']
    #allocation24 [shape = 's32[1]{0}', space=sflag, size = 0x4, scoped, tag = 'scoped memory for tpu_custom_call.1']
    #allocation25 [shape = 'u8[512]{0}', space=vmem, size = 0x400, scoped, tag = 'input window, operand 17, single buffered']
    #allocation26 [shape = 'u8[512]{0}', space=vmem, size = 0x400, scoped, tag = 'input window, operand 18, single buffered']
    #allocation27 [shape = 's32[1]{0}', space=sflag, size = 0x4, scoped, tag = 'scoped memory for tpu_custom_call.1']
    #allocation28 [shape = 'u8[512]{0}', space=vmem, size = 0x400, scoped, tag = 'input window, operand 19, single buffered']
    #allocation29 [shape = 'u8[1024]{0}', space=vmem, size = 0x400, scoped, tag = 'output window, operand 0, single buffered']
    #allocation30 [shape = 'u8[8192]{0}', space=vmem, size = 0x2000, scoped, tag = 'output window, operand 1, single buffered']
    #allocation31 [shape = 's32[1]{0}', space=sflag, size = 0x4, scoped, tag = 'scoped memory for tpu_custom_call.1']
    %29 = vsyncpa [#allocation3], 0
    %30 = vsyncpa [#allocation6], 0
    %31 = vsyncpa [#allocation9], 0
    %32 = vsyncpa [#allocation12], 0
    %33 = vsyncpa [#allocation15], 0
    %34 = vsyncpa [#allocation18], 0
    %35 = vsyncpa [#allocation21], 0
    %36 = vsyncpa [#allocation24], 0
    %37 = vsyncpa [#allocation27], 0
    %38 = vsyncpa [#allocation4], 0
    %39 = vsyncpa [#allocation31], 0
    // Predicated region
    $region2: #{tpu_custom_call.1} parent=1 // pred_check
      _
    $region3: #{tpu_custom_call.1} parent=1 // pred_check_branch
      %41 = sbr.rel (0) target = $region5
    $region4: #{tpu_custom_call.1} parent=1 // pred_region
      %43 = vsyncadd [#allocation3], 0
      %s44 = sshll.u32 %s0, 4
      %s45 = int_to_ptr.hbm [resolvable:$true] %s44
      %s46 = sshll.u32 [#allocation2], 4
      %s47 = int_to_ptr.vmem [resolvable:$true] %s46
      %52 = dma.hbm_to_vmem [thread:$0]  %s45, 256, %s47, [#allocation3], 128, 128, 8
    $region5: #{tpu_custom_call.1} parent=1 // pred_fallthru
      _
    // Predicated region
    $region6: #{tpu_custom_call.1} parent=1 // pred_check
      _
    $region7: #{tpu_custom_call.1} parent=1 // pred_check_branch
      %54 = sbr.rel (0) target = $region9
    $region8: #{tpu_custom_call.1} parent=1 // pred_region
      %56 = vsyncadd [#allocation6], 0
      %s57 = sshll.u32 %s1, 4
      %s58 = int_to_ptr.hbm [resolvable:$true] %s57
      %s59 = sshll.u32 [#allocation5], 4
      %s60 = int_to_ptr.vmem [resolvable:$true] %s59
      %65 = dma.hbm_to_vmem [thread:$0]  %s58, 256, %s60, [#allocation6], 128, 128, 8
    $region9: #{tpu_custom_call.1} parent=1 // pred_fallthru
      _
    // Predicated region
    $region10: #{tpu_custom_call.1} parent=1 // pred_check
      _
    $region11: #{tpu_custom_call.1} parent=1 // pred_check_branch
      %67 = sbr.rel (0) target = $region13
    $region12: #{tpu_custom_call.1} parent=1 // pred_region
      %69 = vsyncadd [#allocation6], 0
      %s70 = sshll.u32 %s2, 4
      %s71 = int_to_ptr.hbm [resolvable:$true] %s70
      %s72 = sshll.u32 [#allocation7], 4
      %s73 = int_to_ptr.vmem [resolvable:$true] %s72
      %78 = dma.hbm_to_vmem [thread:$0]  %s71, 256, %s73, [#allocation6], 128, 128, 8
    $region13: #{tpu_custom_call.1} parent=1 // pred_fallthru
      _
    // Predicated region
    $region14: #{tpu_custom_call.1} parent=1 // pred_check
      _
    $region15: #{tpu_custom_call.1} parent=1 // pred_check_branch
      %80 = sbr.rel (0) target = $region17
    $region16: #{tpu_custom_call.1} parent=1 // pred_region
      %82 = vsyncadd [#allocation9], 0
      %s83 = sshll.u32 %s3, 4
      %s84 = int_to_ptr.hbm [resolvable:$true] %s83
      %s85 = sshll.u32 [#allocation8], 4
      %s86 = int_to_ptr.vmem [resolvable:$true] %s85
      %91 = dma.hbm_to_vmem [thread:$0]  %s84, 256, %s86, [#allocation9], 64, 64, 4
    $region17: #{tpu_custom_call.1} parent=1 // pred_fallthru
      _
    // Predicated region
    $region18: #{tpu_custom_call.1} parent=1 // pred_check
      _
    $region19: #{tpu_custom_call.1} parent=1 // pred_check_branch
      %93 = sbr.rel (0) target = $region21
    $region20: #{tpu_custom_call.1} parent=1 // pred_region
      %95 = vsyncadd [#allocation9], 0
      %s96 = sshll.u32 %s4, 4
      %s97 = int_to_ptr.hbm [resolvable:$true] %s96
      %s98 = sshll.u32 [#allocation10], 4
      %s99 = int_to_ptr.vmem [resolvable:$true] %s98
      %104 = dma.hbm_to_vmem [thread:$0]  %s97, 256, %s99, [#allocation9], 64, 64, 4
    $region21: #{tpu_custom_call.1} parent=1 // pred_fallthru
      _
    // Predicated region
    $region22: #{tpu_custom_call.1} parent=1 // pred_check
      _
    $region23: #{tpu_custom_call.1} parent=1 // pred_check_branch
      %106 = sbr.rel (0) target = $region25
    $region24: #{tpu_custom_call.1} parent=1 // pred_region
      _
    $region25: #{tpu_custom_call.1} parent=1 // pred_fallthru
      _
    // Predicated region
    $region26: #{tpu_custom_call.1} parent=1 // pred_check
      _
    $region27: #{tpu_custom_call.1} parent=1 // pred_check_branch
      %108 = sbr.rel (0) target = $region29
    $region28: #{tpu_custom_call.1} parent=1 // pred_region
      %110 = vsyncadd [#allocation12], 0
      %s111 = sshll.u32 %s6, 4
      %s112 = int_to_ptr.hbm [resolvable:$true] %s111
      %s113 = sshll.u32 [#allocation11], 4
      %s114 = int_to_ptr.vmem [resolvable:$true] %s113
      %119 = dma.hbm_to_vmem [thread:$0]  %s112, 256, %s114, [#allocation12], 64, 64, 4
    $region29: #{tpu_custom_call.1} parent=1 // pred_fallthru
      _
    // Predicated region
    $region30: #{tpu_custom_call.1} parent=1 // pred_check
      _
    $region31: #{tpu_custom_call.1} parent=1 // pred_check_branch
      %121 = sbr.rel (0) target = $region33
    $region32: #{tpu_custom_call.1} parent=1 // pred_region
      _
    $region33: #{tpu_custom_call.1} parent=1 // pred_fallthru
      _
    // Predicated region
    $region34: #{tpu_custom_call.1} parent=1 // pred_check
      _
    $region35: #{tpu_custom_call.1} parent=1 // pred_check_branch
      %123 = sbr.rel (0) target = $region37
    $region36: #{tpu_custom_call.1} parent=1 // pred_region
      %125 = vsyncadd [#allocation12], 0
      %s126 = sshll.u32 %s8, 4
      %s127 = int_to_ptr.hbm [resolvable:$true] %s126
      %s128 = sshll.u32 [#allocation13], 4
      %s129 = int_to_ptr.vmem [resolvable:$true] %s128
      %134 = dma.hbm_to_vmem [thread:$0]  %s127, 256, %s129, [#allocation12], 64, 64, 4
    $region37: #{tpu_custom_call.1} parent=1 // pred_fallthru
      _
    // Predicated region
    $region38: #{tpu_custom_call.1} parent=1 // pred_check
      _
    $region39: #{tpu_custom_call.1} parent=1 // pred_check_branch
      %136 = sbr.rel (0) target = $region41
    $region40: #{tpu_custom_call.1} parent=1 // pred_region
      _
    $region41: #{tpu_custom_call.1} parent=1 // pred_fallthru
      _
    // Predicated region
    $region42: #{tpu_custom_call.1} parent=1 // pred_check
      _
    $region43: #{tpu_custom_call.1} parent=1 // pred_check_branch
      %138 = sbr.rel (0) target = $region45
    $region44: #{tpu_custom_call.1} parent=1 // pred_region
      %140 = vsyncadd [#allocation15], 0
      %s141 = sshll.u32 %s10, 4
      %s142 = int_to_ptr.hbm [resolvable:$true] %s141
      %s143 = sshll.u32 [#allocation14], 4
      %s144 = int_to_ptr.vmem [resolvable:$true] %s143
      %149 = dma.hbm_to_vmem [thread:$0]  %s142, 256, %s144, [#allocation15], 64, 64, 4
    $region45: #{tpu_custom_call.1} parent=1 // pred_fallthru
      _
    // Predicated region
    $region46: #{tpu_custom_call.1} parent=1 // pred_check
      _
    $region47: #{tpu_custom_call.1} parent=1 // pred_check_branch
      %151 = sbr.rel (0) target = $region49
    $region48: #{tpu_custom_call.1} parent=1 // pred_region
      %153 = vsyncadd [#allocation15], 0
      %s155 = sshll.u32 %s11, 4
      %s156 = int_to_ptr.hbm [resolvable:$true] %s155
      %s157 = sshll.u32 [#allocation16], 4
      %s158 = int_to_ptr.vmem [resolvable:$true] %s157
      %160 = dma.hbm_to_vmem [thread:$0]  %s156, 16, %s158, [#allocation15]
    $region49: #{tpu_custom_call.1} parent=1 // pred_fallthru
      _
    // Predicated region
    $region50: #{tpu_custom_call.1} parent=1 // pred_check
      _
    $region51: #{tpu_custom_call.1} parent=1 // pred_check_branch
      %162 = sbr.rel (0) target = $region53
    $region52: #{tpu_custom_call.1} parent=1 // pred_region
      %164 = vsyncadd [#allocation18], 0
      %s166 = sshll.u32 %s12, 4
      %s167 = int_to_ptr.hbm [resolvable:$true] %s166
      %s168 = sshll.u32 [#allocation17], 4
      %s169 = int_to_ptr.vmem [resolvable:$true] %s168
      %171 = dma.hbm_to_vmem [thread:$0]  %s167, 16, %s169, [#allocation18]
    $region53: #{tpu_custom_call.1} parent=1 // pred_fallthru
      _
    // Predicated region
    $region54: #{tpu_custom_call.1} parent=1 // pred_check
      _
    $region55: #{tpu_custom_call.1} parent=1 // pred_check_branch
      %173 = sbr.rel (0) target = $region57
    $region56: #{tpu_custom_call.1} parent=1 // pred_region
      %175 = vsyncadd [#allocation18], 0
      %s177 = sshll.u32 %s13, 4
      %s178 = int_to_ptr.hbm [resolvable:$true] %s177
      %s179 = sshll.u32 [#allocation19], 4
      %s180 = int_to_ptr.vmem [resolvable:$true] %s179
      %182 = dma.hbm_to_vmem [thread:$0]  %s178, 16, %s180, [#allocation18]
    $region57: #{tpu_custom_call.1} parent=1 // pred_fallthru
      _
    // Predicated region
    $region58: #{tpu_custom_call.1} parent=1 // pred_check
      _
    $region59: #{tpu_custom_call.1} parent=1 // pred_check_branch
      %184 = sbr.rel (0) target = $region61
    $region60: #{tpu_custom_call.1} parent=1 // pred_region
      %186 = vsyncadd [#allocation21], 0
      %s187 = sshll.u32 %s14, 4
      %s188 = int_to_ptr.hbm [resolvable:$true] %s187
      %s189 = sshll.u32 [#allocation20], 4
      %s190 = int_to_ptr.vmem [resolvable:$true] %s189
      %195 = dma.hbm_to_vmem [thread:$0]  %s188, 256, %s190, [#allocation21], 64, 64, 4
    $region61: #{tpu_custom_call.1} parent=1 // pred_fallthru
      _
    // Predicated region
    $region62: #{tpu_custom_call.1} parent=1 // pred_check
      _
    $region63: #{tpu_custom_call.1} parent=1 // pred_check_branch
      %197 = sbr.rel (0) target = $region65
    $region64: #{tpu_custom_call.1} parent=1 // pred_region
      %199 = vsyncadd [#allocation21], 0
      %s201 = sshll.u32 %s15, 4
      %s202 = int_to_ptr.hbm [resolvable:$true] %s201
      %s203 = sshll.u32 [#allocation22], 4
      %s204 = int_to_ptr.vmem [resolvable:$true] %s203
      %206 = dma.hbm_to_vmem [thread:$0]  %s202, 16, %s204, [#allocation21]
    $region65: #{tpu_custom_call.1} parent=1 // pred_fallthru
      _
    // Predicated region
    $region66: #{tpu_custom_call.1} parent=1 // pred_check
      _
    $region67: #{tpu_custom_call.1} parent=1 // pred_check_branch
      %208 = sbr.rel (0) target = $region69
    $region68: #{tpu_custom_call.1} parent=1 // pred_region
      %210 = vsyncadd [#allocation24], 0
      %s211 = sshll.u32 %s16, 4
      %s212 = int_to_ptr.hbm [resolvable:$true] %s211
      %s213 = sshll.u32 [#allocation23], 4
      %s214 = int_to_ptr.vmem [resolvable:$true] %s213
      %219 = dma.hbm_to_vmem [thread:$0]  %s212, 256, %s214, [#allocation24], 64, 64, 4
    $region69: #{tpu_custom_call.1} parent=1 // pred_fallthru
      _
    // Predicated region
    $region70: #{tpu_custom_call.1} parent=1 // pred_check
      _
    $region71: #{tpu_custom_call.1} parent=1 // pred_check_branch
      %221 = sbr.rel (0) target = $region73
    $region72: #{tpu_custom_call.1} parent=1 // pred_region
      %223 = vsyncadd [#allocation24], 0
      %s225 = sshll.u32 %s17, 4
      %s226 = int_to_ptr.hbm [resolvable:$true] %s225
      %s227 = sshll.u32 [#allocation25], 4
      %s228 = int_to_ptr.vmem [resolvable:$true] %s227
      %230 = dma.hbm_to_vmem [thread:$0]  %s226, 16, %s228, [#allocation24]
    $region73: #{tpu_custom_call.1} parent=1 // pred_fallthru
      _
    // Predicated region
    $region74: #{tpu_custom_call.1} parent=1 // pred_check
      _
    $region75: #{tpu_custom_call.1} parent=1 // pred_check_branch
      %232 = sbr.rel (0) target = $region77
    $region76: #{tpu_custom_call.1} parent=1 // pred_region
      %234 = vsyncadd [#allocation27], 0
      %s236 = sshll.u32 %s18, 4
      %s237 = int_to_ptr.hbm [resolvable:$true] %s236
      %s238 = sshll.u32 [#allocation26], 4
      %s239 = int_to_ptr.vmem [resolvable:$true] %s238
      %241 = dma.hbm_to_vmem [thread:$0]  %s237, 16, %s239, [#allocation27]
    $region77: #{tpu_custom_call.1} parent=1 // pred_fallthru
      _
    // Predicated region
    $region78: #{tpu_custom_call.1} parent=1 // pred_check
      _
    $region79: #{tpu_custom_call.1} parent=1 // pred_check_branch
      %243 = sbr.rel (0) target = $region81
    $region80: #{tpu_custom_call.1} parent=1 // pred_region
      %245 = vsyncadd [#allocation27], 0
      %s247 = sshll.u32 %s19, 4
      %s248 = int_to_ptr.hbm [resolvable:$true] %s247
      %s249 = sshll.u32 [#allocation28], 4
      %s250 = int_to_ptr.vmem [resolvable:$true] %s249
      %252 = dma.hbm_to_vmem [thread:$0]  %s248, 16, %s250, [#allocation27]
    $region81: #{tpu_custom_call.1} parent=1 // pred_fallthru
      _
    // Predicated region
    $region82: #{tpu_custom_call.1} parent=1 // pred_check
      _
    $region83: #{tpu_custom_call.1} parent=1 // pred_check_branch
      %254 = sbr.rel (0) target = $region85
    $region84: #{tpu_custom_call.1} parent=1 // pred_region
      _
    $region85: #{tpu_custom_call.1} parent=1 // pred_fallthru
      _
    // Predicated region
    $region86: #{tpu_custom_call.1} parent=1 // pred_check
      _
    $region87: #{tpu_custom_call.1} parent=1 // pred_check_branch
      %256 = sbr.rel (0) target = $region89
    $region88: #{tpu_custom_call.1} parent=1 // pred_region
      _
    $region89: #{tpu_custom_call.1} parent=1 // pred_fallthru
      _
    // Predicated region
    $region90: #{tpu_custom_call.1} parent=1 // pred_check
      _
    $region91: #{tpu_custom_call.1} parent=1 // pred_check_branch
      %258 = sbr.rel (0) target = $region93
    $region92: #{tpu_custom_call.1} parent=1 // pred_region
      %260 = dma.done [#allocation3], 256
    $region93: #{tpu_custom_call.1} parent=1 // pred_fallthru
      _
    // Predicated region
    $region94: #{tpu_custom_call.1} parent=1 // pred_check
      _
    $region95: #{tpu_custom_call.1} parent=1 // pred_check_branch
      %262 = sbr.rel (0) target = $region97
    $region96: #{tpu_custom_call.1} parent=1 // pred_region
      %264 = dma.done [#allocation6], 256
    $region97: #{tpu_custom_call.1} parent=1 // pred_fallthru
      _
    // Predicated region
    $region98: #{tpu_custom_call.1} parent=1 // pred_check
      _
    $region99: #{tpu_custom_call.1} parent=1 // pred_check_branch
      %266 = sbr.rel (0) target = $region101
    $region100: #{tpu_custom_call.1} parent=1 // pred_region
      %268 = dma.done [#allocation6], 256
    $region101: #{tpu_custom_call.1} parent=1 // pred_fallthru
      _
    // Predicated region
    $region102: #{tpu_custom_call.1} parent=1 // pred_check
      _
    $region103: #{tpu_custom_call.1} parent=1 // pred_check_branch
      %270 = sbr.rel (0) target = $region105
    $region104: #{tpu_custom_call.1} parent=1 // pred_region
      %272 = dma.done [#allocation9], 256
    $region105: #{tpu_custom_call.1} parent=1 // pred_fallthru
      _
    // Predicated region
    $region106: #{tpu_custom_call.1} parent=1 // pred_check
      _
    $region107: #{tpu_custom_call.1} parent=1 // pred_check_branch
      %274 = sbr.rel (0) target = $region109
    $region108: #{tpu_custom_call.1} parent=1 // pred_region
      %276 = dma.done [#allocation9], 256
    $region109: #{tpu_custom_call.1} parent=1 // pred_fallthru
      _
    // Predicated region
    $region110: #{tpu_custom_call.1} parent=1 // pred_check
      _
    $region111: #{tpu_custom_call.1} parent=1 // pred_check_branch
      %278 = sbr.rel (0) target = $region113
    $region112: #{tpu_custom_call.1} parent=1 // pred_region
      %280 = dma.done [#allocation12], 256
    $region113: #{tpu_custom_call.1} parent=1 // pred_fallthru
      _
    // Predicated region
    $region114: #{tpu_custom_call.1} parent=1 // pred_check
      _
    $region115: #{tpu_custom_call.1} parent=1 // pred_check_branch
      %282 = sbr.rel (0) target = $region117
    $region116: #{tpu_custom_call.1} parent=1 // pred_region
      %284 = dma.done [#allocation12], 256
    $region117: #{tpu_custom_call.1} parent=1 // pred_fallthru
      _
    // Predicated region
    $region118: #{tpu_custom_call.1} parent=1 // pred_check
      _
    $region119: #{tpu_custom_call.1} parent=1 // pred_check_branch
      %286 = sbr.rel (0) target = $region121
    $region120: #{tpu_custom_call.1} parent=1 // pred_region
      %288 = dma.done [#allocation15], 256
    $region121: #{tpu_custom_call.1} parent=1 // pred_fallthru
      _
    // Predicated region
    $region122: #{tpu_custom_call.1} parent=1 // pred_check
      _
    $region123: #{tpu_custom_call.1} parent=1 // pred_check_branch
      %290 = sbr.rel (0) target = $region125
    $region124: #{tpu_custom_call.1} parent=1 // pred_region
      %292 = dma.done [#allocation15], 16
    $region125: #{tpu_custom_call.1} parent=1 // pred_fallthru
      _
    // Predicated region
    $region126: #{tpu_custom_call.1} parent=1 // pred_check
      _
    $region127: #{tpu_custom_call.1} parent=1 // pred_check_branch
      %294 = sbr.rel (0) target = $region129
    $region128: #{tpu_custom_call.1} parent=1 // pred_region
      %296 = dma.done [#allocation18], 16
    $region129: #{tpu_custom_call.1} parent=1 // pred_fallthru
      _
    // Predicated region
    $region130: #{tpu_custom_call.1} parent=1 // pred_check
      _
    $region131: #{tpu_custom_call.1} parent=1 // pred_check_branch
      %298 = sbr.rel (0) target = $region133
    $region132: #{tpu_custom_call.1} parent=1 // pred_region
      %300 = dma.done [#allocation18], 16
    $region133: #{tpu_custom_call.1} parent=1 // pred_fallthru
      _
    // Predicated region
    $region134: #{tpu_custom_call.1} parent=1 // pred_check
      _
    $region135: #{tpu_custom_call.1} parent=1 // pred_check_branch
      %302 = sbr.rel (0) target = $region137
    $region136: #{tpu_custom_call.1} parent=1 // pred_region
      %304 = dma.done [#allocation21], 256
    $region137: #{tpu_custom_call.1} parent=1 // pred_fallthru
      _
    // Predicated region
    $region138: #{tpu_custom_call.1} parent=1 // pred_check
      _
    $region139: #{tpu_custom_call.1} parent=1 // pred_check_branch
      %306 = sbr.rel (0) target = $region141
    $region140: #{tpu_custom_call.1} parent=1 // pred_region
      %308 = dma.done [#allocation21], 16
    $region141: #{tpu_custom_call.1} parent=1 // pred_fallthru
      _
    // Predicated region
    $region142: #{tpu_custom_call.1} parent=1 // pred_check
      _
    $region143: #{tpu_custom_call.1} parent=1 // pred_check_branch
      %310 = sbr.rel (0) target = $region145
    $region144: #{tpu_custom_call.1} parent=1 // pred_region
      %312 = dma.done [#allocation24], 256
    $region145: #{tpu_custom_call.1} parent=1 // pred_fallthru
      _
    // Predicated region
    $region146: #{tpu_custom_call.1} parent=1 // pred_check
      _
    $region147: #{tpu_custom_call.1} parent=1 // pred_check_branch
      %314 = sbr.rel (0) target = $region149
    $region148: #{tpu_custom_call.1} parent=1 // pred_region
      %316 = dma.done [#allocation24], 16
    $region149: #{tpu_custom_call.1} parent=1 // pred_fallthru
      _
    // Predicated region
    $region150: #{tpu_custom_call.1} parent=1 // pred_check
      _
    $region151: #{tpu_custom_call.1} parent=1 // pred_check_branch
      %318 = sbr.rel (0) target = $region153
    $region152: #{tpu_custom_call.1} parent=1 // pred_region
      %320 = dma.done [#allocation27], 16
    $region153: #{tpu_custom_call.1} parent=1 // pred_fallthru
      _
    // Predicated region
    $region154: #{tpu_custom_call.1} parent=1 // pred_check
      _
    $region155: #{tpu_custom_call.1} parent=1 // pred_check_branch
      %322 = sbr.rel (0) target = $region157
    $region156: #{tpu_custom_call.1} parent=1 // pred_region
      %324 = dma.done [#allocation27], 16
    $region157: #{tpu_custom_call.1} parent=1 // pred_fallthru
      _
    %v326 = vld [vmem:[#allocation2] sm:$0xff]
    %v327 = vld [vmem:[#allocation2 + $0x8] sm:$0xff]
    %v328 = vpack.c.bf16 %v327, %v326
    %v329 = vld [vmem:[#allocation10] sm:$0xf]
    %v330 = vld [vmem:[#allocation10 + $0x4] sm:$0xf]
    %v331 = vld [vmem:[#allocation10 + $0x8] sm:$0xf]
    %v332 = vld [vmem:[#allocation10 + $0xc] sm:$0xf]
    %v333 = vld [vmem:[%s5] sm:$0x1]
    %v335 = vperm.slane %v333, 0
    %v341 = vunpack.c.l.b16 %v329
    %v342 = vunpack.c.l.b16 %v330
    %v343 = vunpack.c.l.b16 %v331
    %v344 = vunpack.c.l.b16 %v332
    %v345 = vpack.c.b16 %v342, %v341
    %v346 = vpack.c.b16 %v344, %v343
    %vm349 = vcmask 261120
    %v351 = vsel %vm349, %v328, 0
    %353 = vmatpush.bf16.msra.mxu0 0
    %354 = vmatpush.bf16.msra.mxu0 0
    %355 = vmatpush.bf16.msra.mxu0 0
    %356 = vmatpush.bf16.msra.mxu0 0
    %357 = vmatpush.bf16.msra.mxu0 0
    %358 = vmatpush.bf16.msra.mxu0 0
    %359 = vmatpush.bf16.msra.mxu0 %v346
    %360 = vmatpush.bf16.msra.mxu0 %v345
    %361 = vmatmul.bf16.gmra.mxu0 %v351
    %v362 = vpop.f32.mrf.mxu0
    %v363 = vadd.f32 %v335, %v362
    %v364 = vpop.f32.mrf.mxu0
    %v365 = vadd.f32 %v335, %v364
    %366 = vdwg.mxu0
    %v367 = vld [vmem:[#allocation5] sm:$0xff]
    %v368 = vld [vmem:[#allocation5 + $0x8] sm:$0xff]
    %v369 = vpack.c.bf16 %v367, %v367
    %v370 = vpack.c.bf16 %v368, %v368
    %v371 = vld [vmem:[#allocation11] sm:$0xf]
    %v372 = vld [vmem:[#allocation11 + $0x4] sm:$0xf]
    %v373 = vld [vmem:[#allocation11 + $0x8] sm:$0xf]
    %v374 = vld [vmem:[#allocation11 + $0xc] sm:$0xf]
    %v375 = vld [vmem:[%s7] sm:$0x1]
    %v377 = vperm.slane %v375, 0
    %v381 = vunpack.c.l.b16 %v369
    %v382 = vunpack.c.l.b16 %v370
    %v383 = vpack.c.b16 %v382, %v381
    %v388 = vunpack.c.l.b16 %v371
    %v389 = vunpack.c.l.b16 %v372
    %v390 = vunpack.c.l.b16 %v373
    %v391 = vunpack.c.l.b16 %v374
    %v392 = vpack.c.b16 %v389, %v388
    %v393 = vpack.c.b16 %v391, %v390
    %v397 = vsel %vm349, %v383, 0
    %399 = vmatpush.bf16.msra.mxu0 0
    %400 = vmatpush.bf16.msra.mxu0 0
    %401 = vmatpush.bf16.msra.mxu0 0
    %402 = vmatpush.bf16.msra.mxu0 0
    %403 = vmatpush.bf16.msra.mxu0 0
    %404 = vmatpush.bf16.msra.mxu0 0
    %405 = vmatpush.bf16.msra.mxu0 %v393
    %406 = vmatpush.bf16.msra.mxu0 %v392
    %407 = vmatmul.bf16.gmra.mxu0 %v397
    %v408 = vpop.f32.mrf.mxu0
    %v409 = vadd.f32 %v377, %v408
    %v410 = vpop.f32.mrf.mxu0
    %v411 = vadd.f32 %v377, %v410
    %412 = vdwg.mxu0
    %v413 = vld [vmem:[#allocation7] sm:$0xff]
    %v414 = vld [vmem:[#allocation7 + $0x8] sm:$0xff]
    %v415 = vpack.c.bf16 %v413, %v413
    %v416 = vpack.c.bf16 %v414, %v414
    %v417 = vld [vmem:[#allocation13] sm:$0xf]
    %v418 = vld [vmem:[#allocation13 + $0x4] sm:$0xf]
    %v419 = vld [vmem:[#allocation13 + $0x8] sm:$0xf]
    %v420 = vld [vmem:[#allocation13 + $0xc] sm:$0xf]
    %v421 = vld [vmem:[%s9] sm:$0x1]
    %v423 = vperm.slane %v421, 0
    %v427 = vunpack.c.l.b16 %v415
    %v428 = vunpack.c.l.b16 %v416
    %v429 = vpack.c.b16 %v428, %v427
    %v434 = vunpack.c.l.b16 %v417
    %v435 = vunpack.c.l.b16 %v418
    %v436 = vunpack.c.l.b16 %v419
    %v437 = vunpack.c.l.b16 %v420
    %v438 = vpack.c.b16 %v435, %v434
    %v439 = vpack.c.b16 %v437, %v436
    %v443 = vsel %vm349, %v429, 0
    %445 = vmatpush.bf16.msra.mxu0 0
    %446 = vmatpush.bf16.msra.mxu0 0
    %447 = vmatpush.bf16.msra.mxu0 0
    %448 = vmatpush.bf16.msra.mxu0 0
    %449 = vmatpush.bf16.msra.mxu0 0
    %450 = vmatpush.bf16.msra.mxu0 0
    %451 = vmatpush.bf16.msra.mxu0 %v439
    %452 = vmatpush.bf16.msra.mxu0 %v438
    %453 = vmatmul.bf16.gmra.mxu0 %v443
    %v454 = vpop.f32.mrf.mxu0
    %v455 = vadd.f32 %v423, %v454
    %v456 = vpop.f32.mrf.mxu0
    %v457 = vadd.f32 %v423, %v456
    %458 = vdwg.mxu0
    %v459 = vld [vmem:[#allocation8] sm:$0xf]
    %v460 = vld [vmem:[#allocation8 + $0x4] sm:$0xf]
    %v461 = vld [vmem:[#allocation8 + $0x8] sm:$0xf]
    %v462 = vld [vmem:[#allocation8 + $0xc] sm:$0xf]
    %v463 = vpack.c.bf16 %v363, %v363
    %v464 = vpack.c.bf16 %v365, %v365
    %v465 = vpack.c.bf16 %v409, %v409
    %v466 = vpack.c.bf16 %v411, %v411
    %v469 = vunpack.c.l.b16 %v465
    %v470 = vunpack.c.l.b16 %v466
    %v471 = vpack.c.b16 %v469, %v469
    %v472 = vpack.c.b16 %v470, %v470
    %vm473 = vcmask 1043456
    %v476 = vsel %vm473, %v465, %v471
    %v480 = vsel %vm473, %v466, %v472
    %v482 = vunpack.c.l.bf16 %v476
    %v483 = vunpack.c.h.bf16 %v476
    %v484 = vunpack.c.l.bf16 %v480
    %v485 = vunpack.c.h.bf16 %v480
    %v486 = vunpack.c.l.bf16 %v459
    %v487 = vunpack.c.l.bf16 %v460
    %v488 = vunpack.c.l.bf16 %v461
    %v489 = vunpack.c.l.bf16 %v462
    %v490 = vmul.f32 %v482, %v486
    %v491 = vmul.f32 %v483, %v487
    %v492 = vmul.f32 %v482, %v488
    %v493 = vmul.f32 %v483, %v489
    %v494 = vmul.f32 %v484, %v486
    %v495 = vmul.f32 %v485, %v487
    %v496 = vmul.f32 %v484, %v488
    %v497 = vmul.f32 %v485, %v489
    %v498 = vpack.c.bf16 %v490, %v490
    %v499 = vpack.c.bf16 %v491, %v491
    %v500 = vpack.c.bf16 %v492, %v492
    %v501 = vpack.c.bf16 %v493, %v493
    %v502 = vpack.c.bf16 %v494, %v494
    %v503 = vpack.c.bf16 %v495, %v495
    %v504 = vpack.c.bf16 %v496, %v496
    %v505 = vpack.c.bf16 %v497, %v497
    %v506 = vpack.c.bf16 %v455, %v455
    %v507 = vpack.c.bf16 %v457, %v457
    %v510 = vunpack.c.l.b16 %v506
    %v511 = vunpack.c.l.b16 %v507
    %v512 = vpack.c.b16 %v510, %v510
    %v513 = vpack.c.b16 %v511, %v511
    %v516 = vsel %vm473, %v506, %v512
    %v520 = vsel %vm473, %v507, %v513
    %v522 = vunpack.c.l.bf16 %v516
    %v523 = vunpack.c.h.bf16 %v516
    %v524 = vunpack.c.l.bf16 %v520
    %v525 = vunpack.c.h.bf16 %v520
    %v526 = vmul.f32 %v522, %v486
    %v527 = vmul.f32 %v523, %v487
    %v528 = vmul.f32 %v522, %v488
    %v529 = vmul.f32 %v523, %v489
    %v530 = vmul.f32 %v524, %v486
    %v531 = vmul.f32 %v525, %v487
    %v532 = vmul.f32 %v524, %v488
    %v533 = vmul.f32 %v525, %v489
    %v534 = vpack.c.bf16 %v526, %v526
    %v535 = vpack.c.bf16 %v527, %v527
    %v536 = vpack.c.bf16 %v528, %v528
    %v537 = vpack.c.bf16 %v529, %v529
    %v538 = vpack.c.bf16 %v530, %v530
    %v539 = vpack.c.bf16 %v531, %v531
    %v540 = vpack.c.bf16 %v532, %v532
    %v541 = vpack.c.bf16 %v533, %v533
    %v546 = vunpack.c.l.b16 %v498
    %v547 = vunpack.c.l.b16 %v499
    %v548 = vunpack.c.l.b16 %v500
    %v549 = vunpack.c.l.b16 %v501
    %v550 = vpack.c.b16 %v547, %v546
    %v551 = vpack.c.b16 %v549, %v548
    %v553 = vsel %vm349, %v463, 0
    %v556 = vsel %vm349, %v550, 0
    %v559 = vsel %vm349, %v551, 0
    %561 = vmatpush.bf16.xpose.msra.mxu0 0
    %562 = vmatpush.bf16.xpose.msra.mxu0 0
    %563 = vmatpush.bf16.xpose.msra.mxu0 0
    %564 = vmatpush.bf16.xpose.msra.mxu0 0
    %565 = vmatpush.bf16.xpose.msra.mxu0 0
    %566 = vmatpush.bf16.xpose.msra.mxu0 0
    %567 = vmatpush.bf16.xpose.msra.mxu0 %v559
    %568 = vmatpush.bf16.xpose.msra.mxu0 %v556
    %569 = vmatmul.bf16.gmra.mxu0 %v553
    %v570 = vpop.f32.mrf.mxu0
    %v571 = vadd.f32 0.0, %v570
    %v572 = vpop.f32.mrf.mxu0
    %573 = vdwg.mxu0
    %v578 = vunpack.c.l.b16 %v502
    %v579 = vunpack.c.l.b16 %v503
    %v580 = vunpack.c.l.b16 %v504
    %v581 = vunpack.c.l.b16 %v505
    %v582 = vpack.c.b16 %v579, %v578
    %v583 = vpack.c.b16 %v581, %v580
    %v585 = vsel %vm349, %v464, 0
    %v588 = vsel %vm349, %v582, 0
    %v591 = vsel %vm349, %v583, 0
    %593 = vmatpush.bf16.xpose.msra.mxu0 0
    %594 = vmatpush.bf16.xpose.msra.mxu0 0
    %595 = vmatpush.bf16.xpose.msra.mxu0 0
    %596 = vmatpush.bf16.xpose.msra.mxu0 0
    %597 = vmatpush.bf16.xpose.msra.mxu0 0
    %598 = vmatpush.bf16.xpose.msra.mxu0 0
    %599 = vmatpush.bf16.xpose.msra.mxu0 %v591
    %600 = vmatpush.bf16.xpose.msra.mxu0 %v588
    %601 = vmatmul.bf16.gmra.mxu0 %v585
    %v602 = vpop.f32.mrf.mxu0
    %v603 = vadd.f32 0.0, %v602
    %v604 = vpop.f32.mrf.mxu0
    %605 = vdwg.mxu0
    %vm606 = vcmask 64512
    %v607 = vsel %vm606, %v571, -inf
    %608 = vmax.xlane.f32.xlu0 %v607
    %v609 = vpop.xlane.xlu0 %608
    %v610 = vsel %vm606, %v603, -inf
    %611 = vmax.xlane.f32.xlu0 %v610
    %v612 = vpop.xlane.xlu0 %611
    %v613 = vsub.f32 %v571, %v609
    %v614 = vsub.f32 %v603, %v612
    %v615 = vmul.f32 %v613, 1.442695
    %v616 = vpow.pop %v615
    %v617 = vmul.f32 %v614, 1.442695
    %v618 = vpow.pop %v617
    %v619 = vsel %vm606, %v616, 0.0
    %620 = vadd.xlane.f32.xlu0 %v619
    %v621 = vpop.xlane.xlu0 %620
    %v622 = vsel %vm606, %v618, 0.0
    %623 = vadd.xlane.f32.xlu0 %v622
    %v624 = vpop.xlane.xlu0 %623
    %v625 = vrcp.pop %v621
    %v626 = vrcp.pop %v624
    %v627 = vmul.f32 %v616, %v625
    %v628 = vmul.f32 %v618, %v626
    %v629 = vadd.f32 %v627, 0.0
    %v630 = vadd.f32 %v628, 0.0
    %v631 = vpack.c.bf16 %v627, %v627
    %v632 = vpack.c.bf16 %v628, %v628
    %vm633 = vcmask 130112
    %v634 = vsel %vm633, %v571, -inf
    %635 = vmax.xlane.f32.xlu0 %v634
    %v636 = vpop.xlane.xlu0 %635
    %v637 = vsel %vm633, %v603, -inf
    %638 = vmax.xlane.f32.xlu0 %v637
    %v639 = vpop.xlane.xlu0 %638
    %v640 = vsub.f32 %v571, %v636
    %v641 = vsub.f32 %v603, %v639
    %v642 = vmul.f32 %v640, 1.442695
    %v643 = vpow.pop %v642
    %v644 = vmul.f32 %v641, 1.442695
    %v645 = vpow.pop %v644
    %648 = vrot.lane.b32.xlu0 %v643, 120
    %v649 = vpop.permute.xlu0 %648
    %650 = vrot.lane.b32.xlu0 %v645, 120
    %v651 = vpop.permute.xlu0 %650
    %v654 = vsel %vm606, %v649, 0.0
    %655 = vadd.xlane.f32.xlu0 %v654
    %v656 = vpop.xlane.xlu0 %655
    %v657 = vsel %vm606, %v651, 0.0
    %658 = vadd.xlane.f32.xlu0 %v657
    %v659 = vpop.xlane.xlu0 %658
    %v660 = vrcp.pop %v656
    %v661 = vrcp.pop %v659
    %v662 = vmul.f32 %v643, %v660
    %v663 = vmul.f32 %v645, %v661
    %666 = vrot.lane.b32.xlu0 %v662, 120
    %v667 = vpop.permute.xlu0 %666
    %668 = vrot.lane.b32.xlu0 %v663, 120
    %v669 = vpop.permute.xlu0 %668
    %v672 = vadd.f32 %v629, %v667
    %v673 = vadd.f32 %v630, %v669
    %v674 = vpack.c.bf16 %v662, %v662
    %v675 = vpack.c.bf16 %v663, %v663
    %vm676 = vcmask 195712
    %v677 = vsel %vm676, %v571, -inf
    %678 = vmax.xlane.f32.xlu0 %v677
    %v679 = vpop.xlane.xlu0 %678
    %v680 = vsel %vm676, %v603, -inf
    %681 = vmax.xlane.f32.xlu0 %v680
    %v682 = vpop.xlane.xlu0 %681
    %v683 = vsub.f32 %v571, %v679
    %v684 = vsub.f32 %v603, %v682
    %v685 = vmul.f32 %v683, 1.442695
    %v686 = vpow.pop %v685
    %v687 = vmul.f32 %v684, 1.442695
    %v688 = vpow.pop %v687
    %691 = vrot.lane.b32.xlu0 %v686, 112
    %v692 = vpop.permute.xlu0 %691
    %693 = vrot.lane.b32.xlu0 %v688, 112
    %v694 = vpop.permute.xlu0 %693
    %v697 = vsel %vm606, %v692, 0.0
    %698 = vadd.xlane.f32.xlu0 %v697
    %v699 = vpop.xlane.xlu0 %698
    %v700 = vsel %vm606, %v694, 0.0
    %701 = vadd.xlane.f32.xlu0 %v700
    %v702 = vpop.xlane.xlu0 %701
    %v703 = vrcp.pop %v699
    %v704 = vrcp.pop %v702
    %v705 = vmul.f32 %v686, %v703
    %v706 = vmul.f32 %v688, %v704
    %709 = vrot.lane.b32.xlu0 %v705, 112
    %v710 = vpop.permute.xlu0 %709
    %711 = vrot.lane.b32.xlu0 %v706, 112
    %v712 = vpop.permute.xlu0 %711
    %v715 = vadd.f32 %v672, %v710
    %v716 = vadd.f32 %v673, %v712
    %v717 = vpack.c.bf16 %v705, %v705
    %v718 = vpack.c.bf16 %v706, %v706
    %vm719 = vcmask 261312
    %v720 = vsel %vm719, %v571, -inf
    %721 = vmax.xlane.f32.xlu0 %v720
    %v722 = vpop.xlane.xlu0 %721
    %v723 = vsel %vm719, %v603, -inf
    %724 = vmax.xlane.f32.xlu0 %v723
    %v725 = vpop.xlane.xlu0 %724
    %v726 = vsub.f32 %v571, %v722
    %v727 = vsub.f32 %v603, %v725
    %v728 = vmul.f32 %v726, 1.442695
    %v729 = vpow.pop %v728
    %v730 = vmul.f32 %v727, 1.442695
    %v731 = vpow.pop %v730
    %734 = vrot.lane.b32.xlu0 %v729, 104
    %v735 = vpop.permute.xlu0 %734
    %736 = vrot.lane.b32.xlu0 %v731, 104
    %v737 = vpop.permute.xlu0 %736
    %v740 = vsel %vm606, %v735, 0.0
    %741 = vadd.xlane.f32.xlu0 %v740
    %v742 = vpop.xlane.xlu0 %741
    %v743 = vsel %vm606, %v737, 0.0
    %744 = vadd.xlane.f32.xlu0 %v743
    %v745 = vpop.xlane.xlu0 %744
    %v746 = vrcp.pop %v742
    %v747 = vrcp.pop %v745
    %v748 = vmul.f32 %v729, %v746
    %v749 = vmul.f32 %v731, %v747
    %752 = vrot.lane.b32.xlu0 %v748, 104
    %v753 = vpop.permute.xlu0 %752
    %754 = vrot.lane.b32.xlu0 %v749, 104
    %v755 = vpop.permute.xlu0 %754
    %v758 = vadd.f32 %v715, %v753
    %v759 = vadd.f32 %v716, %v755
    %v760 = vpack.c.bf16 %v748, %v748
    %v761 = vpack.c.bf16 %v749, %v749
    %v764 = vsel %vm606, %v631, %v674
    %v767 = vsel %vm606, %v632, %v675
    %vm768 = vcmask 130048
    %v770 = vsel %vm768, %v764, %v717
    %v772 = vsel %vm768, %v767, %v718
    %vm773 = vcmask 195584
    %v775 = vsel %vm773, %v770, %v760
    %v777 = vsel %vm773, %v772, %v761
    %v778 = vmul.f32 %v758, 0.25
    %v779 = vmul.f32 %v759, 0.25
    %v780 = vsel %vm606, %v778, 0.0
    %v781 = vsel %vm606, %v779, 0.0
    %782 = vst [vmem:[#allocation30] sm:$0xff] %v780
    %783 = vst [vmem:[#allocation30 + $0x8] sm:$0xff] %v781
    %v788 = vunpack.c.l.b16 %v534
    %v789 = vunpack.c.l.b16 %v535
    %v790 = vunpack.c.l.b16 %v536
    %v791 = vunpack.c.l.b16 %v537
    %v792 = vpack.c.b16 %v789, %v788
    %v793 = vpack.c.b16 %v791, %v790
    %v796 = vsel %vm349, %v775, 0
    %798 = vmatpush.bf16.msra.mxu0 0
    %799 = vmatpush.bf16.msra.mxu0 0
    %800 = vmatpush.bf16.msra.mxu0 0
    %801 = vmatpush.bf16.msra.mxu0 0
    %802 = vmatpush.bf16.msra.mxu0 0
    %803 = vmatpush.bf16.msra.mxu0 0
    %804 = vmatpush.bf16.msra.mxu0 %v793
    %805 = vmatpush.bf16.msra.mxu0 %v792
    %806 = vmatmul.bf16.gmra.mxu0 %v796
    %v807 = vpop.f32.mrf.mxu0
    %v808 = vadd.f32 0.0, %v807
    %v809 = vpop.f32.mrf.mxu0
    %810 = vdwg.mxu0
    %v815 = vunpack.c.l.b16 %v538
    %v816 = vunpack.c.l.b16 %v539
    %v817 = vunpack.c.l.b16 %v540
    %v818 = vunpack.c.l.b16 %v541
    %v819 = vpack.c.b16 %v816, %v815
    %v820 = vpack.c.b16 %v818, %v817
    %v823 = vsel %vm349, %v777, 0
    %825 = vmatpush.bf16.msra.mxu0 0
    %826 = vmatpush.bf16.msra.mxu0 0
    %827 = vmatpush.bf16.msra.mxu0 0
    %828 = vmatpush.bf16.msra.mxu0 0
    %829 = vmatpush.bf16.msra.mxu0 0
    %830 = vmatpush.bf16.msra.mxu0 0
    %831 = vmatpush.bf16.msra.mxu0 %v820
    %832 = vmatpush.bf16.msra.mxu0 %v819
    %833 = vmatmul.bf16.gmra.mxu0 %v823
    %v834 = vpop.f32.mrf.mxu0
    %v835 = vadd.f32 0.0, %v834
    %v836 = vpop.f32.mrf.mxu0
    %837 = vdwg.mxu0
    %v838 = vpack.c.bf16 %v835, %v808
    %v839 = vld [vmem:[#allocation14] sm:$0xf]
    %v840 = vld [vmem:[#allocation14 + $0x4] sm:$0xf]
    %v841 = vld [vmem:[#allocation14 + $0x8] sm:$0xf]
    %v842 = vld [vmem:[#allocation14 + $0xc] sm:$0xf]
    %v843 = vld [vmem:[#allocation16] sm:$0x1]
    %v845 = vperm.slane %v843, 0
    %v851 = vunpack.c.l.b16 %v839
    %v852 = vunpack.c.l.b16 %v840
    %v853 = vunpack.c.l.b16 %v841
    %v854 = vunpack.c.l.b16 %v842
    %v855 = vpack.c.b16 %v852, %v851
    %v856 = vpack.c.b16 %v854, %v853
    %v860 = vsel %vm349, %v838, 0
    %862 = vmatpush.bf16.msra.mxu0 0
    %863 = vmatpush.bf16.msra.mxu0 0
    %864 = vmatpush.bf16.msra.mxu0 0
    %865 = vmatpush.bf16.msra.mxu0 0
    %866 = vmatpush.bf16.msra.mxu0 0
    %867 = vmatpush.bf16.msra.mxu0 0
    %868 = vmatpush.bf16.msra.mxu0 %v856
    %869 = vmatpush.bf16.msra.mxu0 %v855
    %870 = vmatmul.bf16.gmra.mxu0 %v860
    %v871 = vpop.f32.mrf.mxu0
    %v872 = vadd.f32 %v845, %v871
    %v873 = vpop.f32.mrf.mxu0
    %v874 = vadd.f32 %v845, %v873
    %875 = vdwg.mxu0
    %v876 = vadd.f32 %v326, %v872
    %v877 = vadd.f32 %v327, %v874
    %v878 = vsel %vm349, %v876, 0.0
    %879 = vadd.xlane.f32.xlu0 %v878
    %v880 = vpop.xlane.xlu0 %879
    %v881 = vsel %vm349, %v877, 0.0
    %882 = vadd.xlane.f32.xlu0 %v881
    %v883 = vpop.xlane.xlu0 %882
    %v884 = vrcp.pop 32.0
    %v885 = vmul.f32 32.0, %v884
    %v886 = vsub.f32 1.0, %v885
    %v887 = vmul.f32 %v884, %v886
    %v888 = vadd.f32 %v884, %v887
    %vm889 = vweird.f32 %v884
    %v890 = vsel %vm889, %v884, %v888
    %v891 = vmul.f32 %v880, %v890
    %v892 = vmul.f32 %v883, %v890
    %v893 = vsub.f32 %v876, %v891
    %v894 = vsub.f32 %v877, %v892
    %v895 = vmul.f32 %v893, %v893
    %v896 = vmul.f32 %v894, %v894
    %v897 = vsel %vm349, %v895, 0.0
    %898 = vadd.xlane.f32.xlu0 %v897
    %v899 = vpop.xlane.xlu0 %898
    %v900 = vsel %vm349, %v896, 0.0
    %901 = vadd.xlane.f32.xlu0 %v900
    %v902 = vpop.xlane.xlu0 %901
    %v903 = vmul.f32 %v899, %v890
    %v904 = vmul.f32 %v902, %v890
    %v905 = vadd.f32 %v903, 1e-05
    %v906 = vadd.f32 %v904, 1e-05
    %v907 = vrsqrt.pop %v905
    %v908 = vmul.f32 %v907, %v905
    %v909 = vmul.f32 %v908, %v907
    %v910 = vmul.f32 0.5, %v909
    %v911 = vsub.f32 1.5, %v910
    %v912 = vmul.f32 %v907, %v911
    %vm913 = vweird.f32 %v905
    %vm914 = vweird.f32 %v907
    %vm915 = vmor %vm913, %vm914
    %v916 = vsel %vm915, %v907, %v912
    %v917 = vrsqrt.pop %v906
    %v918 = vmul.f32 %v917, %v906
    %v919 = vmul.f32 %v918, %v917
    %v920 = vmul.f32 0.5, %v919
    %v921 = vsub.f32 1.5, %v920
    %v922 = vmul.f32 %v917, %v921
    %vm923 = vweird.f32 %v906
    %vm924 = vweird.f32 %v917
    %vm925 = vmor %vm923, %vm924
    %v926 = vsel %vm925, %v917, %v922
    %v927 = vmul.f32 %v893, %v916
    %v928 = vmul.f32 %v894, %v926
    %v929 = vld [vmem:[#allocation17] sm:$0x1]
    %v931 = vperm.slane %v929, 0
    %v933 = vmul.f32 %v927, %v931
    %v934 = vmul.f32 %v928, %v931
    %v935 = vld [vmem:[#allocation19] sm:$0x1]
    %v937 = vperm.slane %v935, 0
    %v939 = vadd.f32 %v933, %v937
    %v940 = vadd.f32 %v934, %v937
    %v941 = vpack.c.bf16 %v940, %v939
    %v942 = vld [vmem:[#allocation20] sm:$0xf]
    %v943 = vld [vmem:[#allocation20 + $0x4] sm:$0xf]
    %v944 = vld [vmem:[#allocation20 + $0x8] sm:$0xf]
    %v945 = vld [vmem:[#allocation20 + $0xc] sm:$0xf]
    %v946 = vld [vmem:[#allocation22] sm:$0x1]
    %v948 = vperm.slane %v946, 0
    %v954 = vunpack.c.l.b16 %v942
    %v955 = vunpack.c.l.b16 %v943
    %v956 = vunpack.c.l.b16 %v944
    %v957 = vunpack.c.l.b16 %v945
    %v958 = vpack.c.b16 %v955, %v954
    %v959 = vpack.c.b16 %v957, %v956
    %v963 = vsel %vm349, %v941, 0
    %965 = vmatpush.bf16.msra.mxu0 0
    %966 = vmatpush.bf16.msra.mxu0 0
    %967 = vmatpush.bf16.msra.mxu0 0
    %968 = vmatpush.bf16.msra.mxu0 0
    %969 = vmatpush.bf16.msra.mxu0 0
    %970 = vmatpush.bf16.msra.mxu0 0
    %971 = vmatpush.bf16.msra.mxu0 %v959
    %972 = vmatpush.bf16.msra.mxu0 %v958
    %973 = vmatmul.bf16.gmra.mxu0 %v963
    %v974 = vpop.f32.mrf.mxu0
    %v975 = vadd.f32 %v948, %v974
    %v976 = vpop.f32.mrf.mxu0
    %v977 = vadd.f32 %v948, %v976
    %978 = vdwg.mxu0
    %v979 = vmax.f32 %v975, 0.0
    %v980 = vmax.f32 %v977, 0.0
    %v981 = vpack.c.bf16 %v980, %v979
    %v982 = vld [vmem:[#allocation23] sm:$0xf]
    %v983 = vld [vmem:[#allocation23 + $0x4] sm:$0xf]
    %v984 = vld [vmem:[#allocation23 + $0x8] sm:$0xf]
    %v985 = vld [vmem:[#allocation23 + $0xc] sm:$0xf]
    %v986 = vld [vmem:[#allocation25] sm:$0x1]
    %v988 = vperm.slane %v986, 0
    %v994 = vunpack.c.l.b16 %v982
    %v995 = vunpack.c.l.b16 %v983
    %v996 = vunpack.c.l.b16 %v984
    %v997 = vunpack.c.l.b16 %v985
    %v998 = vpack.c.b16 %v995, %v994
    %v999 = vpack.c.b16 %v997, %v996
    %v1003 = vsel %vm349, %v981, 0
    %1005 = vmatpush.bf16.msra.mxu0 0
    %1006 = vmatpush.bf16.msra.mxu0 0
    %1007 = vmatpush.bf16.msra.mxu0 0
    %1008 = vmatpush.bf16.msra.mxu0 0
    %1009 = vmatpush.bf16.msra.mxu0 0
    %1010 = vmatpush.bf16.msra.mxu0 0
    %1011 = vmatpush.bf16.msra.mxu0 %v999
    %1012 = vmatpush.bf16.msra.mxu0 %v998
    %1013 = vmatmul.bf16.gmra.mxu0 %v1003
    %v1014 = vpop.f32.mrf.mxu0
    %v1015 = vadd.f32 %v988, %v1014
    %v1016 = vpop.f32.mrf.mxu0
    %v1017 = vadd.f32 %v988, %v1016
    %1018 = vdwg.mxu0
    %v1019 = vadd.f32 %v939, %v1015
    %v1020 = vadd.f32 %v940, %v1017
    %v1021 = vsel %vm349, %v1019, 0.0
    %1022 = vadd.xlane.f32.xlu0 %v1021
    %v1023 = vpop.xlane.xlu0 %1022
    %v1024 = vsel %vm349, %v1020, 0.0
    %1025 = vadd.xlane.f32.xlu0 %v1024
    %v1026 = vpop.xlane.xlu0 %1025
    %v1027 = vmul.f32 %v1023, %v890
    %v1028 = vmul.f32 %v1026, %v890
    %v1029 = vsub.f32 %v1019, %v1027
    %v1030 = vsub.f32 %v1020, %v1028
    %v1031 = vmul.f32 %v1029, %v1029
    %v1032 = vmul.f32 %v1030, %v1030
    %v1033 = vsel %vm349, %v1031, 0.0
    %1034 = vadd.xlane.f32.xlu0 %v1033
    %v1035 = vpop.xlane.xlu0 %1034
    %v1036 = vsel %vm349, %v1032, 0.0
    %1037 = vadd.xlane.f32.xlu0 %v1036
    %v1038 = vpop.xlane.xlu0 %1037
    %v1039 = vmul.f32 %v1035, %v890
    %v1040 = vmul.f32 %v1038, %v890
    %v1041 = vadd.f32 %v1039, 1e-05
    %v1042 = vadd.f32 %v1040, 1e-05
    %v1043 = vrsqrt.pop %v1041
    %v1044 = vmul.f32 %v1043, %v1041
    %v1045 = vmul.f32 %v1044, %v1043
    %v1046 = vmul.f32 0.5, %v1045
    %v1047 = vsub.f32 1.5, %v1046
    %v1048 = vmul.f32 %v1043, %v1047
    %vm1049 = vweird.f32 %v1041
    %vm1050 = vweird.f32 %v1043
    %vm1051 = vmor %vm1049, %vm1050
    %v1052 = vsel %vm1051, %v1043, %v1048
    %v1053 = vrsqrt.pop %v1042
    %v1054 = vmul.f32 %v1053, %v1042
    %v1055 = vmul.f32 %v1054, %v1053
    %v1056 = vmul.f32 0.5, %v1055
    %v1057 = vsub.f32 1.5, %v1056
    %v1058 = vmul.f32 %v1053, %v1057
    %vm1059 = vweird.f32 %v1042
    %vm1060 = vweird.f32 %v1053
    %vm1061 = vmor %vm1059, %vm1060
    %v1062 = vsel %vm1061, %v1053, %v1058
    %v1063 = vmul.f32 %v1029, %v1052
    %v1064 = vmul.f32 %v1030, %v1062
    %v1065 = vld [vmem:[#allocation26] sm:$0x1]
    %v1067 = vperm.slane %v1065, 0
    %v1069 = vmul.f32 %v1063, %v1067
    %v1070 = vmul.f32 %v1064, %v1067
    %v1071 = vld [vmem:[#allocation28] sm:$0x1]
    %v1073 = vperm.slane %v1071, 0
    %v1075 = vadd.f32 %v1069, %v1073
    %v1076 = vadd.f32 %v1070, %v1073
    %v1077 = vsel %vm349, %v1075, 0.0
    %v1078 = vrot.slane %v1077, 4
    %v1079 = vadd.f32 %v1077, %v1078
    %v1080 = vrot.slane %v1079, 2
    %v1081 = vadd.f32 %v1079, %v1080
    %v1082 = vrot.slane %v1081, 1
    %v1083 = vadd.f32 %v1081, %v1082
    %v1084 = vsel %vm349, %v1076, 0.0
    %v1085 = vrot.slane %v1084, 4
    %v1086 = vadd.f32 %v1084, %v1085
    %v1087 = vrot.slane %v1086, 2
    %v1088 = vadd.f32 %v1086, %v1087
    %v1089 = vrot.slane %v1088, 1
    %v1090 = vadd.f32 %v1088, %v1089
    %v1091 = vrcp.pop 8.0
    %v1092 = vmul.f32 8.0, %v1091
    %v1093 = vsub.f32 1.0, %v1092
    %v1094 = vmul.f32 %v1091, %v1093
    %v1095 = vadd.f32 %v1091, %v1094
    %vm1096 = vweird.f32 %v1091
    %v1097 = vsel %vm1096, %v1091, %v1095
    %v1098 = vmul.f32 %v1083, %v1097
    %v1099 = vmul.f32 %v1090, %v1097
    %v1100 = vpack.c.bf16 %v1098, %v1098
    %v1101 = vpack.c.bf16 %v1099, %v1099
    %v1102 = vld [vmem:[%s20] sm:$0xf]
    %v1103 = vld [vmem:[%s20 + $0x4] sm:$0xf]
    %v1104 = vld [vmem:[%s20 + $0x8] sm:$0xf]
    %v1105 = vld [vmem:[%s20 + $0xc] sm:$0xf]
    %v1106 = vld [vmem:[%s21] sm:$0x1]
    %v1108 = vperm.slane %v1106, 0
    %v1112 = vunpack.c.l.b16 %v1100
    %v1113 = vunpack.c.l.b16 %v1101
    %vm1114 = vcmask 1041409
    %v1115 = vsel %vm1114, %v1113, %v1112
    %v1116 = vpack.c.b16 %v1115, %v1115
    %v1121 = vunpack.c.l.b16 %v1102
    %v1122 = vunpack.c.l.b16 %v1103
    %v1123 = vunpack.c.l.b16 %v1104
    %v1124 = vunpack.c.l.b16 %v1105
    %v1125 = vpack.c.b16 %v1122, %v1121
    %v1126 = vpack.c.b16 %v1124, %v1123
    %v1130 = vsel %vm349, %v1116, 0
    %1132 = vmatpush.bf16.msra.mxu0 0
    %1133 = vmatpush.bf16.msra.mxu0 0
    %1134 = vmatpush.bf16.msra.mxu0 0
    %1135 = vmatpush.bf16.msra.mxu0 0
    %1136 = vmatpush.bf16.msra.mxu0 0
    %1137 = vmatpush.bf16.msra.mxu0 0
    %1138 = vmatpush.bf16.msra.mxu0 %v1126
    %1139 = vmatpush.bf16.msra.mxu0 %v1125
    %1140 = vmatmul.bf16.gmra.mxu0 %v1130
    %v1141 = vpop.f32.mrf.mxu0
    %v1142 = vadd.f32 %v1108, %v1141
    %v1143 = vpop.f32.mrf.mxu0
    %1144 = vdwg.mxu0
    %1145 = vst [vmem:[#allocation29] sm:$0x3] %v1142
    // Predicated region
    $region158: #{tpu_custom_call.1} parent=1 // pred_check
      _
    $region159: #{tpu_custom_call.1} parent=1 // pred_check_branch
      %1147 = sbr.rel (0) target = $region161
    $region160: #{tpu_custom_call.1} parent=1 // pred_region
      %1149 = vsyncadd [#allocation4], 0
      %s1151 = sshll.u32 [#allocation29], 4
      %s1152 = int_to_ptr.vmem [resolvable:$true] %s1151
      %s1153 = sshll.u32 %s22, 4
      %s1154 = int_to_ptr.hbm [resolvable:$true] %s1153
      %1156 = dma.vmem_to_hbm [thread:$0]  %s1152, 32, %s1154, [#allocation4]
    $region161: #{tpu_custom_call.1} parent=1 // pred_fallthru
      _
    // Predicated region
    $region162: #{tpu_custom_call.1} parent=1 // pred_check
      _
    $region163: #{tpu_custom_call.1} parent=1 // pred_check_branch
      %1158 = sbr.rel (0) target = $region165
    $region164: #{tpu_custom_call.1} parent=1 // pred_region
      %1160 = vsyncadd [#allocation31], 0
      %s1161 = sshll.u32 [#allocation30], 4
      %s1162 = int_to_ptr.vmem [resolvable:$true] %s1161
      %s1163 = sshll.u32 %s23, 4
      %s1164 = int_to_ptr.hbm [resolvable:$true] %s1163
      %1169 = dma.vmem_to_hbm [thread:$0]  %s1162, 256, %s1164, [#allocation31], 128, 128, 8
    $region165: #{tpu_custom_call.1} parent=1 // pred_fallthru
      _
    // Predicated region
    $region166: #{tpu_custom_call.1} parent=1 // pred_check
      _
    $region167: #{tpu_custom_call.1} parent=1 // pred_check_branch
      %1171 = sbr.rel (0) target = $region169
    $region168: #{tpu_custom_call.1} parent=1 // pred_region
      %1173 = dma.done [#allocation4], 32
    $region169: #{tpu_custom_call.1} parent=1 // pred_fallthru
      _
    // Predicated region
    $region170: #{tpu_custom_call.1} parent=1 // pred_check
      _
    $region171: #{tpu_custom_call.1} parent=1 // pred_check_branch
      %1175 = sbr.rel (0) target = $region173
    $region172: #{tpu_custom_call.1} parent=1 // pred_region
      %1177 = dma.done [#allocation31], 256
    $region173: #{tpu_custom_call.1} parent=1 // pred_fallthru
      _
    %1178 = vsyncpa [#allocation3], 1
    %1179 = vsyncpa [#allocation6], 1
    %1180 = vsyncpa [#allocation9], 1
    %1181 = vsyncpa [#allocation12], 1
    %1182 = vsyncpa [#allocation15], 1
    %1183 = vsyncpa [#allocation18], 1
    %1184 = vsyncpa [#allocation21], 1
    %1185 = vsyncpa [#allocation24], 1
    %1186 = vsyncpa [#allocation27], 1
    %1187 = vsyncpa [#allocation4], 1
    %1188 = vsyncpa [#allocation31], 1

</llo_original>
